<compile_context>
chip_gen: v5e
topology: v5e:2x2
jax: 0.10.0
libtpu: 0.0.40
codegen_flags: <defaults>
</compile_context>

<pallas_src>
import jax
import jax.numpy as jnp
from jax.experimental import pallas as pl
from jax.experimental.pallas import tpu as pltpu


def _gru_stack_kernel(x_ref, *refs):
    """Fused multi-layer GRU. refs = (wi_0, wh_0, bi_0, bh_0, ..., out_ref).

    wi_l : (in_dim_l, 3H)  packed [W_ir^T | W_iz^T | W_in^T]
    wh_l : (H, 3H)         packed [W_hr^T | W_hz^T | W_hn^T]
    bi_l : (1, 3H)         packed [b_ir | b_iz | b_in]
    bh_l : (1, 3H)         packed [b_hr | b_hz | b_hn]
    out  : (B, H)          final hidden state of the last layer
    """
    out_ref = refs[-1]
    w_refs = refs[:-1]
    num_layers = len(w_refs) // 4
    H = w_refs[1].shape[0]

    seq = x_ref[...]                              # (T, B, I) f32, whole sequence
    T, B, _ = seq.shape

    h = None
    for layer in range(num_layers):
        wi = w_refs[4 * layer][...]               # (in_dim, 3H)
        wh = w_refs[4 * layer + 1][...]           # (H, 3H)
        bi = w_refs[4 * layer + 2][...]           # (1, 3H)
        bh = w_refs[4 * layer + 3][...]           # (1, 3H)
        in_dim = wi.shape[0]

        # Hoisted input projection for ALL time steps: one big MXU matmul
        # with M = T*B instead of T tiny matmuls with M = B.
        gx_all = jnp.dot(seq.reshape(T * B, in_dim), wi,
                         preferred_element_type=jnp.float32) + bi
        gx_all = gx_all.reshape(T, B, 3 * H)

        h = jnp.zeros((B, H), jnp.float32)
        outs = []
        for t in range(T):                        # fully unrolled (T is static & small)
            gh = jnp.dot(h, wh, preferred_element_type=jnp.float32) + bh
            gx = gx_all[t]
            r = jax.nn.sigmoid(gx[:, 0:H] + gh[:, 0:H])
            z = jax.nn.sigmoid(gx[:, H:2 * H] + gh[:, H:2 * H])
            n = jnp.tanh(gx[:, 2 * H:3 * H] + r * gh[:, 2 * H:3 * H])
            h = (1.0 - z) * n + z * h
            if layer < num_layers - 1:
                outs.append(h)                    # next layer needs the full sequence
        if layer < num_layers - 1:
            seq = jnp.stack(outs, axis=0)         # (T, B, H), stays on-chip

    out_ref[...] = h.astype(out_ref.dtype)        # only h_n[-1] is emitted


def gru_stack_pallas(x_tbi, layer_params):
    """x_tbi: (T, B_pad, I) float32 (B_pad a multiple of 8).
    Returns final hidden state of the last layer, shape (B_pad, H)."""
    T, B, I = x_tbi.shape
    H = layer_params[0][1].shape[0]

    flat = []
    for (wi, wh, bi, bh) in layer_params:
        flat += [wi, wh, bi, bh]

    flops = 0
    for (wi, _, _, _) in layer_params:
        flops += 2 * T * B * (wi.shape[0] + H) * 3 * H
    transcendentals = 3 * T * B * H * len(layer_params)
    bytes_accessed = 4 * (int(x_tbi.size) + sum(int(a.size) for a in flat) + B * H)

    vmem_spec = pl.BlockSpec(memory_space=pltpu.MemorySpace.VMEM)
    return pl.pallas_call(
        _gru_stack_kernel,
        out_shape=jax.ShapeDtypeStruct((B, H), jnp.float32),
        in_specs=[vmem_spec] * (1 + len(flat)),
        out_specs=vmem_spec,
        cost_estimate=pl.CostEstimate(flops=flops,
                                      transcendentals=transcendentals,
                                      bytes_accessed=bytes_accessed),
    )(x_tbi, *flat)


def init_gru_params(key, input_size, hidden_size, num_layers):
    """Deterministic uniform(-1/sqrt(H), 1/sqrt(H)) init, PyTorch-style, packed
    into (in_dim, 3H) / (H, 3H) weights and (1, 3H) biases (gate order r|z|n)."""
    H = hidden_size
    bound = 1.0 / jnp.sqrt(jnp.float32(H))
    layers = []
    for layer in range(num_layers):
        in_dim = input_size if layer == 0 else H
        key, k1, k2, k3, k4 = jax.random.split(key, 5)
        w_ih = jax.random.uniform(k1, (3 * H, in_dim), jnp.float32, -bound, bound)
        w_hh = jax.random.uniform(k2, (3 * H, H), jnp.float32, -bound, bound)
        b_ih = jax.random.uniform(k3, (3 * H,), jnp.float32, -bound, bound)
        b_hh = jax.random.uniform(k4, (3 * H,), jnp.float32, -bound, bound)
        layers.append((w_ih.T, w_hh.T,
                       b_ih.reshape(1, 3 * H), b_hh.reshape(1, 3 * H)))
    return layers


def my_gru_forward(x, layer_params, batch_first=True):
    """x: (B, input_size, L) float32, as fed to the PyTorch module.
    Returns h_n[-1] of shape (B, hidden_size)."""
    # Both MyGRU branches end up feeding a time-major (L, B, I) stream:
    #   batch_first:  x.transpose(1,2) -> (B, L, I), GRU(batch_first=True)
    #   else:         x.permute(2,0,1) -> (L, B, I), GRU(batch_first=False)
    x_tbi = jnp.transpose(x, (2, 0, 1))            # (L, B, I)

    T, B, I = x_tbi.shape
    B_pad = ((B + 7) // 8) * 8                     # pad batch to sublane multiple
    if B_pad != B:
        x_tbi = jnp.pad(x_tbi, ((0, 0), (0, B_pad - B), (0, 0)))

    h_last = gru_stack_pallas(x_tbi, layer_params)  # (B_pad, H)
    return h_last[:B]


def _reference_gru(x_tbi, layer_params):
    """Pure-JAX reference (same packed weights) for verification."""
    seq = x_tbi
    h_last = None
    for (wi, wh, bi, bh) in layer_params:
        H = wh.shape[0]
        B = seq.shape[1]

        def step(h, x_t):
            gx = x_t @ wi + bi
            gh = h @ wh + bh
            r = jax.nn.sigmoid(gx[:, :H] + gh[:, :H])
            z = jax.nn.sigmoid(gx[:, H:2 * H] + gh[:, H:2 * H])
            n = jnp.tanh(gx[:, 2 * H:] + r * gh[:, 2 * H:])
            h_new = (1.0 - z) * n + z * h
            return h_new, h_new

        h0 = jnp.zeros((B, H), jnp.float32)
        h_last, ys = jax.lax.scan(step, h0, seq)
        seq = ys
    return h_last


if __name__ == "__main__":
    # Shapes consistent with the module:
    # x: (batch=2, input_size=4, seq=8); hidden_size=32, num_layers=2, batch_first=True
    B, I, L = 2, 4, 8
    H, NUM_LAYERS = 32, 2
    BATCH_FIRST = True

    key = jax.random.PRNGKey(0)
    kx, kp = jax.random.split(key)
    x = jax.random.normal(kx, (B, I, L), jnp.float32)
    params = init_gru_params(kp, I, H, NUM_LAYERS)

    out = my_gru_forward(x, params, batch_first=BATCH_FIRST)
    out = jax.block_until_ready(out)

    x_tbi = jnp.transpose(x, (2, 0, 1))
    ref = jax.block_until_ready(_reference_gru(x_tbi, params))

    assert out.shape == (B, H), out.shape
    assert jnp.allclose(out, ref, atol=1e-5, rtol=1e-5), "mismatch vs reference"

    print("KERNEL_OK")
</pallas_src>

<mosaic_0001>
module attributes {stable_mosaic.version = 11 : i64} {
  func.func @_gru_stack_kernel(%arg0: memref<8x8x4xf32, #tpu.memory_space<vmem>>, %arg1: memref<4x96xf32, #tpu.memory_space<vmem>>, %arg2: memref<32x96xf32, #tpu.memory_space<vmem>>, %arg3: memref<1x96xf32, #tpu.memory_space<vmem>>, %arg4: memref<1x96xf32, #tpu.memory_space<vmem>>, %arg5: memref<32x96xf32, #tpu.memory_space<vmem>>, %arg6: memref<32x96xf32, #tpu.memory_space<vmem>>, %arg7: memref<1x96xf32, #tpu.memory_space<vmem>>, %arg8: memref<1x96xf32, #tpu.memory_space<vmem>>, %arg9: memref<8x32xf32, #tpu.memory_space<vmem>>) attributes {dimension_semantics = [], scalar_prefetch = 0 : i64, scratch_operands = 0 : i64, tpu.core_type = #tpu.core_type<tc>} {
    %c0 = arith.constant 0 : index
    %c0_0 = arith.constant 0 : index
    %c0_1 = arith.constant 0 : index
    %0 = vector.load %arg0[%c0, %c0_0, %c0_1] : memref<8x8x4xf32, #tpu.memory_space<vmem>>, vector<8x8x4xf32>
    %c0_2 = arith.constant 0 : index
    %c0_3 = arith.constant 0 : index
    %1 = vector.load %arg1[%c0_2, %c0_3] : memref<4x96xf32, #tpu.memory_space<vmem>>, vector<4x96xf32>
    %c0_4 = arith.constant 0 : index
    %c0_5 = arith.constant 0 : index
    %2 = vector.load %arg2[%c0_4, %c0_5] : memref<32x96xf32, #tpu.memory_space<vmem>>, vector<32x96xf32>
    %c0_6 = arith.constant 0 : index
    %c0_7 = arith.constant 0 : index
    %3 = vector.load %arg3[%c0_6, %c0_7] : memref<1x96xf32, #tpu.memory_space<vmem>>, vector<1x96xf32>
    %c0_8 = arith.constant 0 : index
    %c0_9 = arith.constant 0 : index
    %4 = vector.load %arg4[%c0_8, %c0_9] : memref<1x96xf32, #tpu.memory_space<vmem>>, vector<1x96xf32>
    %5 = vector.shape_cast %0 : vector<8x8x4xf32> to vector<64x4xf32>
    %cst = arith.constant dense<0.000000e+00> : vector<64x96xf32>
    %6 = tpu.matmul %5, %1, %cst {dimension_numbers = #tpu.dot_dimension_numbers<[1], [0], [0], [1], [0, 0, 1, 1], [], []>} : vector<64x4xf32>, vector<4x96xf32>, vector<64x96xf32> -> vector<64x96xf32>
    %7 = vector.broadcast %3 : vector<1x96xf32> to vector<64x96xf32>
    %8 = arith.addf %6, %7 : vector<64x96xf32>
    %9 = vector.shape_cast %8 : vector<64x96xf32> to vector<8x8x96xf32>
    %cst_10 = arith.constant 0.000000e+00 : f32
    %10 = vector.broadcast %cst_10 : f32 to vector<8x32xf32>
    %cst_11 = arith.constant dense<0.000000e+00> : vector<8x96xf32>
    %11 = tpu.matmul %10, %2, %cst_11 {dimension_numbers = #tpu.dot_dimension_numbers<[1], [0], [0], [1], [0, 0, 1, 1], [], []>} : vector<8x32xf32>, vector<32x96xf32>, vector<8x96xf32> -> vector<8x96xf32>
    %12 = vector.broadcast %4 : vector<1x96xf32> to vector<8x96xf32>
    %13 = arith.addf %11, %12 : vector<8x96xf32>
    %14 = vector.extract_strided_slice %9 {offsets = [0, 0, 0], sizes = [1, 8, 96], strides = [1, 1, 1]} : vector<8x8x96xf32> to vector<1x8x96xf32>
    %15 = vector.shape_cast %14 : vector<1x8x96xf32> to vector<8x96xf32>
    %16 = vector.extract_strided_slice %15 {offsets = [0, 0], sizes = [8, 32], strides = [1, 1]} : vector<8x96xf32> to vector<8x32xf32>
    %17 = vector.extract_strided_slice %13 {offsets = [0, 0], sizes = [8, 32], strides = [1, 1]} : vector<8x96xf32> to vector<8x32xf32>
    %18 = arith.addf %16, %17 : vector<8x32xf32>
    %19 = arith.negf %18 : vector<8x32xf32>
    %20 = math.exp %19 : vector<8x32xf32>
    %cst_12 = arith.constant 1.000000e+00 : f32
    %21 = vector.broadcast %cst_12 : f32 to vector<8x32xf32>
    %22 = arith.addf %21, %20 : vector<8x32xf32>
    %23 = arith.divf %21, %22 : vector<8x32xf32>
    %24 = vector.extract_strided_slice %15 {offsets = [0, 32], sizes = [8, 32], strides = [1, 1]} : vector<8x96xf32> to vector<8x32xf32>
    %25 = vector.extract_strided_slice %13 {offsets = [0, 32], sizes = [8, 32], strides = [1, 1]} : vector<8x96xf32> to vector<8x32xf32>
    %26 = arith.addf %24, %25 : vector<8x32xf32>
    %27 = arith.negf %26 : vector<8x32xf32>
    %28 = math.exp %27 : vector<8x32xf32>
    %cst_13 = arith.constant 1.000000e+00 : f32
    %29 = vector.broadcast %cst_13 : f32 to vector<8x32xf32>
    %30 = arith.addf %29, %28 : vector<8x32xf32>
    %31 = arith.divf %29, %30 : vector<8x32xf32>
    %32 = vector.extract_strided_slice %15 {offsets = [0, 64], sizes = [8, 32], strides = [1, 1]} : vector<8x96xf32> to vector<8x32xf32>
    %33 = vector.extract_strided_slice %13 {offsets = [0, 64], sizes = [8, 32], strides = [1, 1]} : vector<8x96xf32> to vector<8x32xf32>
    %34 = arith.mulf %23, %33 : vector<8x32xf32>
    %35 = arith.addf %32, %34 : vector<8x32xf32>
    %36 = math.tanh %35 : vector<8x32xf32>
    %cst_14 = arith.constant 1.000000e+00 : f32
    %37 = vector.broadcast %cst_14 : f32 to vector<8x32xf32>
    %38 = arith.subf %37, %31 : vector<8x32xf32>
    %39 = arith.mulf %38, %36 : vector<8x32xf32>
    %40 = arith.mulf %31, %10 : vector<8x32xf32>
    %41 = arith.addf %39, %40 : vector<8x32xf32>
    %cst_15 = arith.constant dense<0.000000e+00> : vector<8x96xf32>
    %42 = tpu.matmul %41, %2, %cst_15 {dimension_numbers = #tpu.dot_dimension_numbers<[1], [0], [0], [1], [0, 0, 1, 1], [], []>} : vector<8x32xf32>, vector<32x96xf32>, vector<8x96xf32> -> vector<8x96xf32>
    %43 = vector.broadcast %4 : vector<1x96xf32> to vector<8x96xf32>
    %44 = arith.addf %42, %43 : vector<8x96xf32>
    %45 = vector.extract_strided_slice %9 {offsets = [1, 0, 0], sizes = [1, 8, 96], strides = [1, 1, 1]} : vector<8x8x96xf32> to vector<1x8x96xf32>
    %46 = vector.shape_cast %45 : vector<1x8x96xf32> to vector<8x96xf32>
    %47 = vector.extract_strided_slice %46 {offsets = [0, 0], sizes = [8, 32], strides = [1, 1]} : vector<8x96xf32> to vector<8x32xf32>
    %48 = vector.extract_strided_slice %44 {offsets = [0, 0], sizes = [8, 32], strides = [1, 1]} : vector<8x96xf32> to vector<8x32xf32>
    %49 = arith.addf %47, %48 : vector<8x32xf32>
    %50 = arith.negf %49 : vector<8x32xf32>
    %51 = math.exp %50 : vector<8x32xf32>
    %cst_16 = arith.constant 1.000000e+00 : f32
    %52 = vector.broadcast %cst_16 : f32 to vector<8x32xf32>
    %53 = arith.addf %52, %51 : vector<8x32xf32>
    %54 = arith.divf %52, %53 : vector<8x32xf32>
    %55 = vector.extract_strided_slice %46 {offsets = [0, 32], sizes = [8, 32], strides = [1, 1]} : vector<8x96xf32> to vector<8x32xf32>
    %56 = vector.extract_strided_slice %44 {offsets = [0, 32], sizes = [8, 32], strides = [1, 1]} : vector<8x96xf32> to vector<8x32xf32>
    %57 = arith.addf %55, %56 : vector<8x32xf32>
    %58 = arith.negf %57 : vector<8x32xf32>
    %59 = math.exp %58 : vector<8x32xf32>
    %cst_17 = arith.constant 1.000000e+00 : f32
    %60 = vector.broadcast %cst_17 : f32 to vector<8x32xf32>
    %61 = arith.addf %60, %59 : vector<8x32xf32>
    %62 = arith.divf %60, %61 : vector<8x32xf32>
    %63 = vector.extract_strided_slice %46 {offsets = [0, 64], sizes = [8, 32], strides = [1, 1]} : vector<8x96xf32> to vector<8x32xf32>
    %64 = vector.extract_strided_slice %44 {offsets = [0, 64], sizes = [8, 32], strides = [1, 1]} : vector<8x96xf32> to vector<8x32xf32>
    %65 = arith.mulf %54, %64 : vector<8x32xf32>
    %66 = arith.addf %63, %65 : vector<8x32xf32>
    %67 = math.tanh %66 : vector<8x32xf32>
    %cst_18 = arith.constant 1.000000e+00 : f32
    %68 = vector.broadcast %cst_18 : f32 to vector<8x32xf32>
    %69 = arith.subf %68, %62 : vector<8x32xf32>
    %70 = arith.mulf %69, %67 : vector<8x32xf32>
    %71 = arith.mulf %62, %41 : vector<8x32xf32>
    %72 = arith.addf %70, %71 : vector<8x32xf32>
    %cst_19 = arith.constant dense<0.000000e+00> : vector<8x96xf32>
    %73 = tpu.matmul %72, %2, %cst_19 {dimension_numbers = #tpu.dot_dimension_numbers<[1], [0], [0], [1], [0, 0, 1, 1], [], []>} : vector<8x32xf32>, vector<32x96xf32>, vector<8x96xf32> -> vector<8x96xf32>
    %74 = vector.broadcast %4 : vector<1x96xf32> to vector<8x96xf32>
    %75 = arith.addf %73, %74 : vector<8x96xf32>
    %76 = vector.extract_strided_slice %9 {offsets = [2, 0, 0], sizes = [1, 8, 96], strides = [1, 1, 1]} : vector<8x8x96xf32> to vector<1x8x96xf32>
    %77 = vector.shape_cast %76 : vector<1x8x96xf32> to vector<8x96xf32>
    %78 = vector.extract_strided_slice %77 {offsets = [0, 0], sizes = [8, 32], strides = [1, 1]} : vector<8x96xf32> to vector<8x32xf32>
    %79 = vector.extract_strided_slice %75 {offsets = [0, 0], sizes = [8, 32], strides = [1, 1]} : vector<8x96xf32> to vector<8x32xf32>
    %80 = arith.addf %78, %79 : vector<8x32xf32>
    %81 = arith.negf %80 : vector<8x32xf32>
    %82 = math.exp %81 : vector<8x32xf32>
    %cst_20 = arith.constant 1.000000e+00 : f32
    %83 = vector.broadcast %cst_20 : f32 to vector<8x32xf32>
    %84 = arith.addf %83, %82 : vector<8x32xf32>
    %85 = arith.divf %83, %84 : vector<8x32xf32>
    %86 = vector.extract_strided_slice %77 {offsets = [0, 32], sizes = [8, 32], strides = [1, 1]} : vector<8x96xf32> to vector<8x32xf32>
    %87 = vector.extract_strided_slice %75 {offsets = [0, 32], sizes = [8, 32], strides = [1, 1]} : vector<8x96xf32> to vector<8x32xf32>
    %88 = arith.addf %86, %87 : vector<8x32xf32>
    %89 = arith.negf %88 : vector<8x32xf32>
    %90 = math.exp %89 : vector<8x32xf32>
    %cst_21 = arith.constant 1.000000e+00 : f32
    %91 = vector.broadcast %cst_21 : f32 to vector<8x32xf32>
    %92 = arith.addf %91, %90 : vector<8x32xf32>
    %93 = arith.divf %91, %92 : vector<8x32xf32>
    %94 = vector.extract_strided_slice %77 {offsets = [0, 64], sizes = [8, 32], strides = [1, 1]} : vector<8x96xf32> to vector<8x32xf32>
    %95 = vector.extract_strided_slice %75 {offsets = [0, 64], sizes = [8, 32], strides = [1, 1]} : vector<8x96xf32> to vector<8x32xf32>
    %96 = arith.mulf %85, %95 : vector<8x32xf32>
    %97 = arith.addf %94, %96 : vector<8x32xf32>
    %98 = math.tanh %97 : vector<8x32xf32>
    %cst_22 = arith.constant 1.000000e+00 : f32
    %99 = vector.broadcast %cst_22 : f32 to vector<8x32xf32>
    %100 = arith.subf %99, %93 : vector<8x32xf32>
    %101 = arith.mulf %100, %98 : vector<8x32xf32>
    %102 = arith.mulf %93, %72 : vector<8x32xf32>
    %103 = arith.addf %101, %102 : vector<8x32xf32>
    %cst_23 = arith.constant dense<0.000000e+00> : vector<8x96xf32>
    %104 = tpu.matmul %103, %2, %cst_23 {dimension_numbers = #tpu.dot_dimension_numbers<[1], [0], [0], [1], [0, 0, 1, 1], [], []>} : vector<8x32xf32>, vector<32x96xf32>, vector<8x96xf32> -> vector<8x96xf32>
    %105 = vector.broadcast %4 : vector<1x96xf32> to vector<8x96xf32>
    %106 = arith.addf %104, %105 : vector<8x96xf32>
    %107 = vector.extract_strided_slice %9 {offsets = [3, 0, 0], sizes = [1, 8, 96], strides = [1, 1, 1]} : vector<8x8x96xf32> to vector<1x8x96xf32>
    %108 = vector.shape_cast %107 : vector<1x8x96xf32> to vector<8x96xf32>
    %109 = vector.extract_strided_slice %108 {offsets = [0, 0], sizes = [8, 32], strides = [1, 1]} : vector<8x96xf32> to vector<8x32xf32>
    %110 = vector.extract_strided_slice %106 {offsets = [0, 0], sizes = [8, 32], strides = [1, 1]} : vector<8x96xf32> to vector<8x32xf32>
    %111 = arith.addf %109, %110 : vector<8x32xf32>
    %112 = arith.negf %111 : vector<8x32xf32>
    %113 = math.exp %112 : vector<8x32xf32>
    %cst_24 = arith.constant 1.000000e+00 : f32
    %114 = vector.broadcast %cst_24 : f32 to vector<8x32xf32>
    %115 = arith.addf %114, %113 : vector<8x32xf32>
    %116 = arith.divf %114, %115 : vector<8x32xf32>
    %117 = vector.extract_strided_slice %108 {offsets = [0, 32], sizes = [8, 32], strides = [1, 1]} : vector<8x96xf32> to vector<8x32xf32>
    %118 = vector.extract_strided_slice %106 {offsets = [0, 32], sizes = [8, 32], strides = [1, 1]} : vector<8x96xf32> to vector<8x32xf32>
    %119 = arith.addf %117, %118 : vector<8x32xf32>
    %120 = arith.negf %119 : vector<8x32xf32>
    %121 = math.exp %120 : vector<8x32xf32>
    %cst_25 = arith.constant 1.000000e+00 : f32
    %122 = vector.broadcast %cst_25 : f32 to vector<8x32xf32>
    %123 = arith.addf %122, %121 : vector<8x32xf32>
    %124 = arith.divf %122, %123 : vector<8x32xf32>
    %125 = vector.extract_strided_slice %108 {offsets = [0, 64], sizes = [8, 32], strides = [1, 1]} : vector<8x96xf32> to vector<8x32xf32>
    %126 = vector.extract_strided_slice %106 {offsets = [0, 64], sizes = [8, 32], strides = [1, 1]} : vector<8x96xf32> to vector<8x32xf32>
    %127 = arith.mulf %116, %126 : vector<8x32xf32>
    %128 = arith.addf %125, %127 : vector<8x32xf32>
    %129 = math.tanh %128 : vector<8x32xf32>
    %cst_26 = arith.constant 1.000000e+00 : f32
    %130 = vector.broadcast %cst_26 : f32 to vector<8x32xf32>
    %131 = arith.subf %130, %124 : vector<8x32xf32>
    %132 = arith.mulf %131, %129 : vector<8x32xf32>
    %133 = arith.mulf %124, %103 : vector<8x32xf32>
    %134 = arith.addf %132, %133 : vector<8x32xf32>
    %cst_27 = arith.constant dense<0.000000e+00> : vector<8x96xf32>
    %135 = tpu.matmul %134, %2, %cst_27 {dimension_numbers = #tpu.dot_dimension_numbers<[1], [0], [0], [1], [0, 0, 1, 1], [], []>} : vector<8x32xf32>, vector<32x96xf32>, vector<8x96xf32> -> vector<8x96xf32>
    %136 = vector.broadcast %4 : vector<1x96xf32> to vector<8x96xf32>
    %137 = arith.addf %135, %136 : vector<8x96xf32>
    %138 = vector.extract_strided_slice %9 {offsets = [4, 0, 0], sizes = [1, 8, 96], strides = [1, 1, 1]} : vector<8x8x96xf32> to vector<1x8x96xf32>
    %139 = vector.shape_cast %138 : vector<1x8x96xf32> to vector<8x96xf32>
    %140 = vector.extract_strided_slice %139 {offsets = [0, 0], sizes = [8, 32], strides = [1, 1]} : vector<8x96xf32> to vector<8x32xf32>
    %141 = vector.extract_strided_slice %137 {offsets = [0, 0], sizes = [8, 32], strides = [1, 1]} : vector<8x96xf32> to vector<8x32xf32>
    %142 = arith.addf %140, %141 : vector<8x32xf32>
    %143 = arith.negf %142 : vector<8x32xf32>
    %144 = math.exp %143 : vector<8x32xf32>
    %cst_28 = arith.constant 1.000000e+00 : f32
    %145 = vector.broadcast %cst_28 : f32 to vector<8x32xf32>
    %146 = arith.addf %145, %144 : vector<8x32xf32>
    %147 = arith.divf %145, %146 : vector<8x32xf32>
    %148 = vector.extract_strided_slice %139 {offsets = [0, 32], sizes = [8, 32], strides = [1, 1]} : vector<8x96xf32> to vector<8x32xf32>
    %149 = vector.extract_strided_slice %137 {offsets = [0, 32], sizes = [8, 32], strides = [1, 1]} : vector<8x96xf32> to vector<8x32xf32>
    %150 = arith.addf %148, %149 : vector<8x32xf32>
    %151 = arith.negf %150 : vector<8x32xf32>
    %152 = math.exp %151 : vector<8x32xf32>
    %cst_29 = arith.constant 1.000000e+00 : f32
    %153 = vector.broadcast %cst_29 : f32 to vector<8x32xf32>
    %154 = arith.addf %153, %152 : vector<8x32xf32>
    %155 = arith.divf %153, %154 : vector<8x32xf32>
    %156 = vector.extract_strided_slice %139 {offsets = [0, 64], sizes = [8, 32], strides = [1, 1]} : vector<8x96xf32> to vector<8x32xf32>
    %157 = vector.extract_strided_slice %137 {offsets = [0, 64], sizes = [8, 32], strides = [1, 1]} : vector<8x96xf32> to vector<8x32xf32>
    %158 = arith.mulf %147, %157 : vector<8x32xf32>
    %159 = arith.addf %156, %158 : vector<8x32xf32>
    %160 = math.tanh %159 : vector<8x32xf32>
    %cst_30 = arith.constant 1.000000e+00 : f32
    %161 = vector.broadcast %cst_30 : f32 to vector<8x32xf32>
    %162 = arith.subf %161, %155 : vector<8x32xf32>
    %163 = arith.mulf %162, %160 : vector<8x32xf32>
    %164 = arith.mulf %155, %134 : vector<8x32xf32>
    %165 = arith.addf %163, %164 : vector<8x32xf32>
    %cst_31 = arith.constant dense<0.000000e+00> : vector<8x96xf32>
    %166 = tpu.matmul %165, %2, %cst_31 {dimension_numbers = #tpu.dot_dimension_numbers<[1], [0], [0], [1], [0, 0, 1, 1], [], []>} : vector<8x32xf32>, vector<32x96xf32>, vector<8x96xf32> -> vector<8x96xf32>
    %167 = vector.broadcast %4 : vector<1x96xf32> to vector<8x96xf32>
    %168 = arith.addf %166, %167 : vector<8x96xf32>
    %169 = vector.extract_strided_slice %9 {offsets = [5, 0, 0], sizes = [1, 8, 96], strides = [1, 1, 1]} : vector<8x8x96xf32> to vector<1x8x96xf32>
    %170 = vector.shape_cast %169 : vector<1x8x96xf32> to vector<8x96xf32>
    %171 = vector.extract_strided_slice %170 {offsets = [0, 0], sizes = [8, 32], strides = [1, 1]} : vector<8x96xf32> to vector<8x32xf32>
    %172 = vector.extract_strided_slice %168 {offsets = [0, 0], sizes = [8, 32], strides = [1, 1]} : vector<8x96xf32> to vector<8x32xf32>
    %173 = arith.addf %171, %172 : vector<8x32xf32>
    %174 = arith.negf %173 : vector<8x32xf32>
    %175 = math.exp %174 : vector<8x32xf32>
    %cst_32 = arith.constant 1.000000e+00 : f32
    %176 = vector.broadcast %cst_32 : f32 to vector<8x32xf32>
    %177 = arith.addf %176, %175 : vector<8x32xf32>
    %178 = arith.divf %176, %177 : vector<8x32xf32>
    %179 = vector.extract_strided_slice %170 {offsets = [0, 32], sizes = [8, 32], strides = [1, 1]} : vector<8x96xf32> to vector<8x32xf32>
    %180 = vector.extract_strided_slice %168 {offsets = [0, 32], sizes = [8, 32], strides = [1, 1]} : vector<8x96xf32> to vector<8x32xf32>
    %181 = arith.addf %179, %180 : vector<8x32xf32>
    %182 = arith.negf %181 : vector<8x32xf32>
    %183 = math.exp %182 : vector<8x32xf32>
    %cst_33 = arith.constant 1.000000e+00 : f32
    %184 = vector.broadcast %cst_33 : f32 to vector<8x32xf32>
    %185 = arith.addf %184, %183 : vector<8x32xf32>
    %186 = arith.divf %184, %185 : vector<8x32xf32>
    %187 = vector.extract_strided_slice %170 {offsets = [0, 64], sizes = [8, 32], strides = [1, 1]} : vector<8x96xf32> to vector<8x32xf32>
    %188 = vector.extract_strided_slice %168 {offsets = [0, 64], sizes = [8, 32], strides = [1, 1]} : vector<8x96xf32> to vector<8x32xf32>
    %189 = arith.mulf %178, %188 : vector<8x32xf32>
    %190 = arith.addf %187, %189 : vector<8x32xf32>
    %191 = math.tanh %190 : vector<8x32xf32>
    %cst_34 = arith.constant 1.000000e+00 : f32
    %192 = vector.broadcast %cst_34 : f32 to vector<8x32xf32>
    %193 = arith.subf %192, %186 : vector<8x32xf32>
    %194 = arith.mulf %193, %191 : vector<8x32xf32>
    %195 = arith.mulf %186, %165 : vector<8x32xf32>
    %196 = arith.addf %194, %195 : vector<8x32xf32>
    %cst_35 = arith.constant dense<0.000000e+00> : vector<8x96xf32>
    %197 = tpu.matmul %196, %2, %cst_35 {dimension_numbers = #tpu.dot_dimension_numbers<[1], [0], [0], [1], [0, 0, 1, 1], [], []>} : vector<8x32xf32>, vector<32x96xf32>, vector<8x96xf32> -> vector<8x96xf32>
    %198 = vector.broadcast %4 : vector<1x96xf32> to vector<8x96xf32>
    %199 = arith.addf %197, %198 : vector<8x96xf32>
    %200 = vector.extract_strided_slice %9 {offsets = [6, 0, 0], sizes = [1, 8, 96], strides = [1, 1, 1]} : vector<8x8x96xf32> to vector<1x8x96xf32>
    %201 = vector.shape_cast %200 : vector<1x8x96xf32> to vector<8x96xf32>
    %202 = vector.extract_strided_slice %201 {offsets = [0, 0], sizes = [8, 32], strides = [1, 1]} : vector<8x96xf32> to vector<8x32xf32>
    %203 = vector.extract_strided_slice %199 {offsets = [0, 0], sizes = [8, 32], strides = [1, 1]} : vector<8x96xf32> to vector<8x32xf32>
    %204 = arith.addf %202, %203 : vector<8x32xf32>
    %205 = arith.negf %204 : vector<8x32xf32>
    %206 = math.exp %205 : vector<8x32xf32>
    %cst_36 = arith.constant 1.000000e+00 : f32
    %207 = vector.broadcast %cst_36 : f32 to vector<8x32xf32>
    %208 = arith.addf %207, %206 : vector<8x32xf32>
    %209 = arith.divf %207, %208 : vector<8x32xf32>
    %210 = vector.extract_strided_slice %201 {offsets = [0, 32], sizes = [8, 32], strides = [1, 1]} : vector<8x96xf32> to vector<8x32xf32>
    %211 = vector.extract_strided_slice %199 {offsets = [0, 32], sizes = [8, 32], strides = [1, 1]} : vector<8x96xf32> to vector<8x32xf32>
    %212 = arith.addf %210, %211 : vector<8x32xf32>
    %213 = arith.negf %212 : vector<8x32xf32>
    %214 = math.exp %213 : vector<8x32xf32>
    %cst_37 = arith.constant 1.000000e+00 : f32
    %215 = vector.broadcast %cst_37 : f32 to vector<8x32xf32>
    %216 = arith.addf %215, %214 : vector<8x32xf32>
    %217 = arith.divf %215, %216 : vector<8x32xf32>
    %218 = vector.extract_strided_slice %201 {offsets = [0, 64], sizes = [8, 32], strides = [1, 1]} : vector<8x96xf32> to vector<8x32xf32>
    %219 = vector.extract_strided_slice %199 {offsets = [0, 64], sizes = [8, 32], strides = [1, 1]} : vector<8x96xf32> to vector<8x32xf32>
    %220 = arith.mulf %209, %219 : vector<8x32xf32>
    %221 = arith.addf %218, %220 : vector<8x32xf32>
    %222 = math.tanh %221 : vector<8x32xf32>
    %cst_38 = arith.constant 1.000000e+00 : f32
    %223 = vector.broadcast %cst_38 : f32 to vector<8x32xf32>
    %224 = arith.subf %223, %217 : vector<8x32xf32>
    %225 = arith.mulf %224, %222 : vector<8x32xf32>
    %226 = arith.mulf %217, %196 : vector<8x32xf32>
    %227 = arith.addf %225, %226 : vector<8x32xf32>
    %cst_39 = arith.constant dense<0.000000e+00> : vector<8x96xf32>
    %228 = tpu.matmul %227, %2, %cst_39 {dimension_numbers = #tpu.dot_dimension_numbers<[1], [0], [0], [1], [0, 0, 1, 1], [], []>} : vector<8x32xf32>, vector<32x96xf32>, vector<8x96xf32> -> vector<8x96xf32>
    %229 = vector.broadcast %4 : vector<1x96xf32> to vector<8x96xf32>
    %230 = arith.addf %228, %229 : vector<8x96xf32>
    %231 = vector.extract_strided_slice %9 {offsets = [7, 0, 0], sizes = [1, 8, 96], strides = [1, 1, 1]} : vector<8x8x96xf32> to vector<1x8x96xf32>
    %232 = vector.shape_cast %231 : vector<1x8x96xf32> to vector<8x96xf32>
    %233 = vector.extract_strided_slice %232 {offsets = [0, 0], sizes = [8, 32], strides = [1, 1]} : vector<8x96xf32> to vector<8x32xf32>
    %234 = vector.extract_strided_slice %230 {offsets = [0, 0], sizes = [8, 32], strides = [1, 1]} : vector<8x96xf32> to vector<8x32xf32>
    %235 = arith.addf %233, %234 : vector<8x32xf32>
    %236 = arith.negf %235 : vector<8x32xf32>
    %237 = math.exp %236 : vector<8x32xf32>
    %cst_40 = arith.constant 1.000000e+00 : f32
    %238 = vector.broadcast %cst_40 : f32 to vector<8x32xf32>
    %239 = arith.addf %238, %237 : vector<8x32xf32>
    %240 = arith.divf %238, %239 : vector<8x32xf32>
    %241 = vector.extract_strided_slice %232 {offsets = [0, 32], sizes = [8, 32], strides = [1, 1]} : vector<8x96xf32> to vector<8x32xf32>
    %242 = vector.extract_strided_slice %230 {offsets = [0, 32], sizes = [8, 32], strides = [1, 1]} : vector<8x96xf32> to vector<8x32xf32>
    %243 = arith.addf %241, %242 : vector<8x32xf32>
    %244 = arith.negf %243 : vector<8x32xf32>
    %245 = math.exp %244 : vector<8x32xf32>
    %cst_41 = arith.constant 1.000000e+00 : f32
    %246 = vector.broadcast %cst_41 : f32 to vector<8x32xf32>
    %247 = arith.addf %246, %245 : vector<8x32xf32>
    %248 = arith.divf %246, %247 : vector<8x32xf32>
    %249 = vector.extract_strided_slice %232 {offsets = [0, 64], sizes = [8, 32], strides = [1, 1]} : vector<8x96xf32> to vector<8x32xf32>
    %250 = vector.extract_strided_slice %230 {offsets = [0, 64], sizes = [8, 32], strides = [1, 1]} : vector<8x96xf32> to vector<8x32xf32>
    %251 = arith.mulf %240, %250 : vector<8x32xf32>
    %252 = arith.addf %249, %251 : vector<8x32xf32>
    %253 = math.tanh %252 : vector<8x32xf32>
    %cst_42 = arith.constant 1.000000e+00 : f32
    %254 = vector.broadcast %cst_42 : f32 to vector<8x32xf32>
    %255 = arith.subf %254, %248 : vector<8x32xf32>
    %256 = arith.mulf %255, %253 : vector<8x32xf32>
    %257 = arith.mulf %248, %227 : vector<8x32xf32>
    %258 = arith.addf %256, %257 : vector<8x32xf32>
    %259 = vector.shape_cast %41 : vector<8x32xf32> to vector<1x8x32xf32>
    %260 = vector.shape_cast %72 : vector<8x32xf32> to vector<1x8x32xf32>
    %261 = vector.shape_cast %103 : vector<8x32xf32> to vector<1x8x32xf32>
    %262 = vector.shape_cast %134 : vector<8x32xf32> to vector<1x8x32xf32>
    %263 = vector.shape_cast %165 : vector<8x32xf32> to vector<1x8x32xf32>
    %264 = vector.shape_cast %196 : vector<8x32xf32> to vector<1x8x32xf32>
    %265 = vector.shape_cast %227 : vector<8x32xf32> to vector<1x8x32xf32>
    %266 = vector.shape_cast %258 : vector<8x32xf32> to vector<1x8x32xf32>
    %267 = tpu.concatenate %259, %260, %261, %262, %263, %264, %265, %266 in 0 : vector<1x8x32xf32>, vector<1x8x32xf32>, vector<1x8x32xf32>, vector<1x8x32xf32>, vector<1x8x32xf32>, vector<1x8x32xf32>, vector<1x8x32xf32>, vector<1x8x32xf32> -> vector<8x8x32xf32>
    %c0_43 = arith.constant 0 : index
    %c0_44 = arith.constant 0 : index
    %268 = vector.load %arg5[%c0_43, %c0_44] : memref<32x96xf32, #tpu.memory_space<vmem>>, vector<32x96xf32>
    %c0_45 = arith.constant 0 : index
    %c0_46 = arith.constant 0 : index
    %269 = vector.load %arg6[%c0_45, %c0_46] : memref<32x96xf32, #tpu.memory_space<vmem>>, vector<32x96xf32>
    %c0_47 = arith.constant 0 : index
    %c0_48 = arith.constant 0 : index
    %270 = vector.load %arg7[%c0_47, %c0_48] : memref<1x96xf32, #tpu.memory_space<vmem>>, vector<1x96xf32>
    %c0_49 = arith.constant 0 : index
    %c0_50 = arith.constant 0 : index
    %271 = vector.load %arg8[%c0_49, %c0_50] : memref<1x96xf32, #tpu.memory_space<vmem>>, vector<1x96xf32>
    %272 = vector.shape_cast %267 : vector<8x8x32xf32> to vector<64x32xf32>
    %cst_51 = arith.constant dense<0.000000e+00> : vector<64x96xf32>
    %273 = tpu.matmul %272, %268, %cst_51 {dimension_numbers = #tpu.dot_dimension_numbers<[1], [0], [0], [1], [0, 0, 1, 1], [], []>} : vector<64x32xf32>, vector<32x96xf32>, vector<64x96xf32> -> vector<64x96xf32>
    %274 = vector.broadcast %270 : vector<1x96xf32> to vector<64x96xf32>
    %275 = arith.addf %273, %274 : vector<64x96xf32>
    %276 = vector.shape_cast %275 : vector<64x96xf32> to vector<8x8x96xf32>
    %cst_52 = arith.constant 0.000000e+00 : f32
    %277 = vector.broadcast %cst_52 : f32 to vector<8x32xf32>
    %cst_53 = arith.constant dense<0.000000e+00> : vector<8x96xf32>
    %278 = tpu.matmul %277, %269, %cst_53 {dimension_numbers = #tpu.dot_dimension_numbers<[1], [0], [0], [1], [0, 0, 1, 1], [], []>} : vector<8x32xf32>, vector<32x96xf32>, vector<8x96xf32> -> vector<8x96xf32>
    %279 = vector.broadcast %271 : vector<1x96xf32> to vector<8x96xf32>
    %280 = arith.addf %278, %279 : vector<8x96xf32>
    %281 = vector.extract_strided_slice %276 {offsets = [0, 0, 0], sizes = [1, 8, 96], strides = [1, 1, 1]} : vector<8x8x96xf32> to vector<1x8x96xf32>
    %282 = vector.shape_cast %281 : vector<1x8x96xf32> to vector<8x96xf32>
    %283 = vector.extract_strided_slice %282 {offsets = [0, 0], sizes = [8, 32], strides = [1, 1]} : vector<8x96xf32> to vector<8x32xf32>
    %284 = vector.extract_strided_slice %280 {offsets = [0, 0], sizes = [8, 32], strides = [1, 1]} : vector<8x96xf32> to vector<8x32xf32>
    %285 = arith.addf %283, %284 : vector<8x32xf32>
    %286 = arith.negf %285 : vector<8x32xf32>
    %287 = math.exp %286 : vector<8x32xf32>
    %cst_54 = arith.constant 1.000000e+00 : f32
    %288 = vector.broadcast %cst_54 : f32 to vector<8x32xf32>
    %289 = arith.addf %288, %287 : vector<8x32xf32>
    %290 = arith.divf %288, %289 : vector<8x32xf32>
    %291 = vector.extract_strided_slice %282 {offsets = [0, 32], sizes = [8, 32], strides = [1, 1]} : vector<8x96xf32> to vector<8x32xf32>
    %292 = vector.extract_strided_slice %280 {offsets = [0, 32], sizes = [8, 32], strides = [1, 1]} : vector<8x96xf32> to vector<8x32xf32>
    %293 = arith.addf %291, %292 : vector<8x32xf32>
    %294 = arith.negf %293 : vector<8x32xf32>
    %295 = math.exp %294 : vector<8x32xf32>
    %cst_55 = arith.constant 1.000000e+00 : f32
    %296 = vector.broadcast %cst_55 : f32 to vector<8x32xf32>
    %297 = arith.addf %296, %295 : vector<8x32xf32>
    %298 = arith.divf %296, %297 : vector<8x32xf32>
    %299 = vector.extract_strided_slice %282 {offsets = [0, 64], sizes = [8, 32], strides = [1, 1]} : vector<8x96xf32> to vector<8x32xf32>
    %300 = vector.extract_strided_slice %280 {offsets = [0, 64], sizes = [8, 32], strides = [1, 1]} : vector<8x96xf32> to vector<8x32xf32>
    %301 = arith.mulf %290, %300 : vector<8x32xf32>
    %302 = arith.addf %299, %301 : vector<8x32xf32>
    %303 = math.tanh %302 : vector<8x32xf32>
    %cst_56 = arith.constant 1.000000e+00 : f32
    %304 = vector.broadcast %cst_56 : f32 to vector<8x32xf32>
    %305 = arith.subf %304, %298 : vector<8x32xf32>
    %306 = arith.mulf %305, %303 : vector<8x32xf32>
    %307 = arith.mulf %298, %277 : vector<8x32xf32>
    %308 = arith.addf %306, %307 : vector<8x32xf32>
    %cst_57 = arith.constant dense<0.000000e+00> : vector<8x96xf32>
    %309 = tpu.matmul %308, %269, %cst_57 {dimension_numbers = #tpu.dot_dimension_numbers<[1], [0], [0], [1], [0, 0, 1, 1], [], []>} : vector<8x32xf32>, vector<32x96xf32>, vector<8x96xf32> -> vector<8x96xf32>
    %310 = vector.broadcast %271 : vector<1x96xf32> to vector<8x96xf32>
    %311 = arith.addf %309, %310 : vector<8x96xf32>
    %312 = vector.extract_strided_slice %276 {offsets = [1, 0, 0], sizes = [1, 8, 96], strides = [1, 1, 1]} : vector<8x8x96xf32> to vector<1x8x96xf32>
    %313 = vector.shape_cast %312 : vector<1x8x96xf32> to vector<8x96xf32>
    %314 = vector.extract_strided_slice %313 {offsets = [0, 0], sizes = [8, 32], strides = [1, 1]} : vector<8x96xf32> to vector<8x32xf32>
    %315 = vector.extract_strided_slice %311 {offsets = [0, 0], sizes = [8, 32], strides = [1, 1]} : vector<8x96xf32> to vector<8x32xf32>
    %316 = arith.addf %314, %315 : vector<8x32xf32>
    %317 = arith.negf %316 : vector<8x32xf32>
    %318 = math.exp %317 : vector<8x32xf32>
    %cst_58 = arith.constant 1.000000e+00 : f32
    %319 = vector.broadcast %cst_58 : f32 to vector<8x32xf32>
    %320 = arith.addf %319, %318 : vector<8x32xf32>
    %321 = arith.divf %319, %320 : vector<8x32xf32>
    %322 = vector.extract_strided_slice %313 {offsets = [0, 32], sizes = [8, 32], strides = [1, 1]} : vector<8x96xf32> to vector<8x32xf32>
    %323 = vector.extract_strided_slice %311 {offsets = [0, 32], sizes = [8, 32], strides = [1, 1]} : vector<8x96xf32> to vector<8x32xf32>
    %324 = arith.addf %322, %323 : vector<8x32xf32>
    %325 = arith.negf %324 : vector<8x32xf32>
    %326 = math.exp %325 : vector<8x32xf32>
    %cst_59 = arith.constant 1.000000e+00 : f32
    %327 = vector.broadcast %cst_59 : f32 to vector<8x32xf32>
    %328 = arith.addf %327, %326 : vector<8x32xf32>
    %329 = arith.divf %327, %328 : vector<8x32xf32>
    %330 = vector.extract_strided_slice %313 {offsets = [0, 64], sizes = [8, 32], strides = [1, 1]} : vector<8x96xf32> to vector<8x32xf32>
    %331 = vector.extract_strided_slice %311 {offsets = [0, 64], sizes = [8, 32], strides = [1, 1]} : vector<8x96xf32> to vector<8x32xf32>
    %332 = arith.mulf %321, %331 : vector<8x32xf32>
    %333 = arith.addf %330, %332 : vector<8x32xf32>
    %334 = math.tanh %333 : vector<8x32xf32>
    %cst_60 = arith.constant 1.000000e+00 : f32
    %335 = vector.broadcast %cst_60 : f32 to vector<8x32xf32>
    %336 = arith.subf %335, %329 : vector<8x32xf32>
    %337 = arith.mulf %336, %334 : vector<8x32xf32>
    %338 = arith.mulf %329, %308 : vector<8x32xf32>
    %339 = arith.addf %337, %338 : vector<8x32xf32>
    %cst_61 = arith.constant dense<0.000000e+00> : vector<8x96xf32>
    %340 = tpu.matmul %339, %269, %cst_61 {dimension_numbers = #tpu.dot_dimension_numbers<[1], [0], [0], [1], [0, 0, 1, 1], [], []>} : vector<8x32xf32>, vector<32x96xf32>, vector<8x96xf32> -> vector<8x96xf32>
    %341 = vector.broadcast %271 : vector<1x96xf32> to vector<8x96xf32>
    %342 = arith.addf %340, %341 : vector<8x96xf32>
    %343 = vector.extract_strided_slice %276 {offsets = [2, 0, 0], sizes = [1, 8, 96], strides = [1, 1, 1]} : vector<8x8x96xf32> to vector<1x8x96xf32>
    %344 = vector.shape_cast %343 : vector<1x8x96xf32> to vector<8x96xf32>
    %345 = vector.extract_strided_slice %344 {offsets = [0, 0], sizes = [8, 32], strides = [1, 1]} : vector<8x96xf32> to vector<8x32xf32>
    %346 = vector.extract_strided_slice %342 {offsets = [0, 0], sizes = [8, 32], strides = [1, 1]} : vector<8x96xf32> to vector<8x32xf32>
    %347 = arith.addf %345, %346 : vector<8x32xf32>
    %348 = arith.negf %347 : vector<8x32xf32>
    %349 = math.exp %348 : vector<8x32xf32>
    %cst_62 = arith.constant 1.000000e+00 : f32
    %350 = vector.broadcast %cst_62 : f32 to vector<8x32xf32>
    %351 = arith.addf %350, %349 : vector<8x32xf32>
    %352 = arith.divf %350, %351 : vector<8x32xf32>
    %353 = vector.extract_strided_slice %344 {offsets = [0, 32], sizes = [8, 32], strides = [1, 1]} : vector<8x96xf32> to vector<8x32xf32>
    %354 = vector.extract_strided_slice %342 {offsets = [0, 32], sizes = [8, 32], strides = [1, 1]} : vector<8x96xf32> to vector<8x32xf32>
    %355 = arith.addf %353, %354 : vector<8x32xf32>
    %356 = arith.negf %355 : vector<8x32xf32>
    %357 = math.exp %356 : vector<8x32xf32>
    %cst_63 = arith.constant 1.000000e+00 : f32
    %358 = vector.broadcast %cst_63 : f32 to vector<8x32xf32>
    %359 = arith.addf %358, %357 : vector<8x32xf32>
    %360 = arith.divf %358, %359 : vector<8x32xf32>
    %361 = vector.extract_strided_slice %344 {offsets = [0, 64], sizes = [8, 32], strides = [1, 1]} : vector<8x96xf32> to vector<8x32xf32>
    %362 = vector.extract_strided_slice %342 {offsets = [0, 64], sizes = [8, 32], strides = [1, 1]} : vector<8x96xf32> to vector<8x32xf32>
    %363 = arith.mulf %352, %362 : vector<8x32xf32>
    %364 = arith.addf %361, %363 : vector<8x32xf32>
    %365 = math.tanh %364 : vector<8x32xf32>
    %cst_64 = arith.constant 1.000000e+00 : f32
    %366 = vector.broadcast %cst_64 : f32 to vector<8x32xf32>
    %367 = arith.subf %366, %360 : vector<8x32xf32>
    %368 = arith.mulf %367, %365 : vector<8x32xf32>
    %369 = arith.mulf %360, %339 : vector<8x32xf32>
    %370 = arith.addf %368, %369 : vector<8x32xf32>
    %cst_65 = arith.constant dense<0.000000e+00> : vector<8x96xf32>
    %371 = tpu.matmul %370, %269, %cst_65 {dimension_numbers = #tpu.dot_dimension_numbers<[1], [0], [0], [1], [0, 0, 1, 1], [], []>} : vector<8x32xf32>, vector<32x96xf32>, vector<8x96xf32> -> vector<8x96xf32>
    %372 = vector.broadcast %271 : vector<1x96xf32> to vector<8x96xf32>
    %373 = arith.addf %371, %372 : vector<8x96xf32>
    %374 = vector.extract_strided_slice %276 {offsets = [3, 0, 0], sizes = [1, 8, 96], strides = [1, 1, 1]} : vector<8x8x96xf32> to vector<1x8x96xf32>
    %375 = vector.shape_cast %374 : vector<1x8x96xf32> to vector<8x96xf32>
    %376 = vector.extract_strided_slice %375 {offsets = [0, 0], sizes = [8, 32], strides = [1, 1]} : vector<8x96xf32> to vector<8x32xf32>
    %377 = vector.extract_strided_slice %373 {offsets = [0, 0], sizes = [8, 32], strides = [1, 1]} : vector<8x96xf32> to vector<8x32xf32>
    %378 = arith.addf %376, %377 : vector<8x32xf32>
    %379 = arith.negf %378 : vector<8x32xf32>
    %380 = math.exp %379 : vector<8x32xf32>
    %cst_66 = arith.constant 1.000000e+00 : f32
    %381 = vector.broadcast %cst_66 : f32 to vector<8x32xf32>
    %382 = arith.addf %381, %380 : vector<8x32xf32>
    %383 = arith.divf %381, %382 : vector<8x32xf32>
    %384 = vector.extract_strided_slice %375 {offsets = [0, 32], sizes = [8, 32], strides = [1, 1]} : vector<8x96xf32> to vector<8x32xf32>
    %385 = vector.extract_strided_slice %373 {offsets = [0, 32], sizes = [8, 32], strides = [1, 1]} : vector<8x96xf32> to vector<8x32xf32>
    %386 = arith.addf %384, %385 : vector<8x32xf32>
    %387 = arith.negf %386 : vector<8x32xf32>
    %388 = math.exp %387 : vector<8x32xf32>
    %cst_67 = arith.constant 1.000000e+00 : f32
    %389 = vector.broadcast %cst_67 : f32 to vector<8x32xf32>
    %390 = arith.addf %389, %388 : vector<8x32xf32>
    %391 = arith.divf %389, %390 : vector<8x32xf32>
    %392 = vector.extract_strided_slice %375 {offsets = [0, 64], sizes = [8, 32], strides = [1, 1]} : vector<8x96xf32> to vector<8x32xf32>
    %393 = vector.extract_strided_slice %373 {offsets = [0, 64], sizes = [8, 32], strides = [1, 1]} : vector<8x96xf32> to vector<8x32xf32>
    %394 = arith.mulf %383, %393 : vector<8x32xf32>
    %395 = arith.addf %392, %394 : vector<8x32xf32>
    %396 = math.tanh %395 : vector<8x32xf32>
    %cst_68 = arith.constant 1.000000e+00 : f32
    %397 = vector.broadcast %cst_68 : f32 to vector<8x32xf32>
    %398 = arith.subf %397, %391 : vector<8x32xf32>
    %399 = arith.mulf %398, %396 : vector<8x32xf32>
    %400 = arith.mulf %391, %370 : vector<8x32xf32>
    %401 = arith.addf %399, %400 : vector<8x32xf32>
    %cst_69 = arith.constant dense<0.000000e+00> : vector<8x96xf32>
    %402 = tpu.matmul %401, %269, %cst_69 {dimension_numbers = #tpu.dot_dimension_numbers<[1], [0], [0], [1], [0, 0, 1, 1], [], []>} : vector<8x32xf32>, vector<32x96xf32>, vector<8x96xf32> -> vector<8x96xf32>
    %403 = vector.broadcast %271 : vector<1x96xf32> to vector<8x96xf32>
    %404 = arith.addf %402, %403 : vector<8x96xf32>
    %405 = vector.extract_strided_slice %276 {offsets = [4, 0, 0], sizes = [1, 8, 96], strides = [1, 1, 1]} : vector<8x8x96xf32> to vector<1x8x96xf32>
    %406 = vector.shape_cast %405 : vector<1x8x96xf32> to vector<8x96xf32>
    %407 = vector.extract_strided_slice %406 {offsets = [0, 0], sizes = [8, 32], strides = [1, 1]} : vector<8x96xf32> to vector<8x32xf32>
    %408 = vector.extract_strided_slice %404 {offsets = [0, 0], sizes = [8, 32], strides = [1, 1]} : vector<8x96xf32> to vector<8x32xf32>
    %409 = arith.addf %407, %408 : vector<8x32xf32>
    %410 = arith.negf %409 : vector<8x32xf32>
    %411 = math.exp %410 : vector<8x32xf32>
    %cst_70 = arith.constant 1.000000e+00 : f32
    %412 = vector.broadcast %cst_70 : f32 to vector<8x32xf32>
    %413 = arith.addf %412, %411 : vector<8x32xf32>
    %414 = arith.divf %412, %413 : vector<8x32xf32>
    %415 = vector.extract_strided_slice %406 {offsets = [0, 32], sizes = [8, 32], strides = [1, 1]} : vector<8x96xf32> to vector<8x32xf32>
    %416 = vector.extract_strided_slice %404 {offsets = [0, 32], sizes = [8, 32], strides = [1, 1]} : vector<8x96xf32> to vector<8x32xf32>
    %417 = arith.addf %415, %416 : vector<8x32xf32>
    %418 = arith.negf %417 : vector<8x32xf32>
    %419 = math.exp %418 : vector<8x32xf32>
    %cst_71 = arith.constant 1.000000e+00 : f32
    %420 = vector.broadcast %cst_71 : f32 to vector<8x32xf32>
    %421 = arith.addf %420, %419 : vector<8x32xf32>
    %422 = arith.divf %420, %421 : vector<8x32xf32>
    %423 = vector.extract_strided_slice %406 {offsets = [0, 64], sizes = [8, 32], strides = [1, 1]} : vector<8x96xf32> to vector<8x32xf32>
    %424 = vector.extract_strided_slice %404 {offsets = [0, 64], sizes = [8, 32], strides = [1, 1]} : vector<8x96xf32> to vector<8x32xf32>
    %425 = arith.mulf %414, %424 : vector<8x32xf32>
    %426 = arith.addf %423, %425 : vector<8x32xf32>
    %427 = math.tanh %426 : vector<8x32xf32>
    %cst_72 = arith.constant 1.000000e+00 : f32
    %428 = vector.broadcast %cst_72 : f32 to vector<8x32xf32>
    %429 = arith.subf %428, %422 : vector<8x32xf32>
    %430 = arith.mulf %429, %427 : vector<8x32xf32>
    %431 = arith.mulf %422, %401 : vector<8x32xf32>
    %432 = arith.addf %430, %431 : vector<8x32xf32>
    %cst_73 = arith.constant dense<0.000000e+00> : vector<8x96xf32>
    %433 = tpu.matmul %432, %269, %cst_73 {dimension_numbers = #tpu.dot_dimension_numbers<[1], [0], [0], [1], [0, 0, 1, 1], [], []>} : vector<8x32xf32>, vector<32x96xf32>, vector<8x96xf32> -> vector<8x96xf32>
    %434 = vector.broadcast %271 : vector<1x96xf32> to vector<8x96xf32>
    %435 = arith.addf %433, %434 : vector<8x96xf32>
    %436 = vector.extract_strided_slice %276 {offsets = [5, 0, 0], sizes = [1, 8, 96], strides = [1, 1, 1]} : vector<8x8x96xf32> to vector<1x8x96xf32>
    %437 = vector.shape_cast %436 : vector<1x8x96xf32> to vector<8x96xf32>
    %438 = vector.extract_strided_slice %437 {offsets = [0, 0], sizes = [8, 32], strides = [1, 1]} : vector<8x96xf32> to vector<8x32xf32>
    %439 = vector.extract_strided_slice %435 {offsets = [0, 0], sizes = [8, 32], strides = [1, 1]} : vector<8x96xf32> to vector<8x32xf32>
    %440 = arith.addf %438, %439 : vector<8x32xf32>
    %441 = arith.negf %440 : vector<8x32xf32>
    %442 = math.exp %441 : vector<8x32xf32>
    %cst_74 = arith.constant 1.000000e+00 : f32
    %443 = vector.broadcast %cst_74 : f32 to vector<8x32xf32>
    %444 = arith.addf %443, %442 : vector<8x32xf32>
    %445 = arith.divf %443, %444 : vector<8x32xf32>
    %446 = vector.extract_strided_slice %437 {offsets = [0, 32], sizes = [8, 32], strides = [1, 1]} : vector<8x96xf32> to vector<8x32xf32>
    %447 = vector.extract_strided_slice %435 {offsets = [0, 32], sizes = [8, 32], strides = [1, 1]} : vector<8x96xf32> to vector<8x32xf32>
    %448 = arith.addf %446, %447 : vector<8x32xf32>
    %449 = arith.negf %448 : vector<8x32xf32>
    %450 = math.exp %449 : vector<8x32xf32>
    %cst_75 = arith.constant 1.000000e+00 : f32
    %451 = vector.broadcast %cst_75 : f32 to vector<8x32xf32>
    %452 = arith.addf %451, %450 : vector<8x32xf32>
    %453 = arith.divf %451, %452 : vector<8x32xf32>
    %454 = vector.extract_strided_slice %437 {offsets = [0, 64], sizes = [8, 32], strides = [1, 1]} : vector<8x96xf32> to vector<8x32xf32>
    %455 = vector.extract_strided_slice %435 {offsets = [0, 64], sizes = [8, 32], strides = [1, 1]} : vector<8x96xf32> to vector<8x32xf32>
    %456 = arith.mulf %445, %455 : vector<8x32xf32>
    %457 = arith.addf %454, %456 : vector<8x32xf32>
    %458 = math.tanh %457 : vector<8x32xf32>
    %cst_76 = arith.constant 1.000000e+00 : f32
    %459 = vector.broadcast %cst_76 : f32 to vector<8x32xf32>
    %460 = arith.subf %459, %453 : vector<8x32xf32>
    %461 = arith.mulf %460, %458 : vector<8x32xf32>
    %462 = arith.mulf %453, %432 : vector<8x32xf32>
    %463 = arith.addf %461, %462 : vector<8x32xf32>
    %cst_77 = arith.constant dense<0.000000e+00> : vector<8x96xf32>
    %464 = tpu.matmul %463, %269, %cst_77 {dimension_numbers = #tpu.dot_dimension_numbers<[1], [0], [0], [1], [0, 0, 1, 1], [], []>} : vector<8x32xf32>, vector<32x96xf32>, vector<8x96xf32> -> vector<8x96xf32>
    %465 = vector.broadcast %271 : vector<1x96xf32> to vector<8x96xf32>
    %466 = arith.addf %464, %465 : vector<8x96xf32>
    %467 = vector.extract_strided_slice %276 {offsets = [6, 0, 0], sizes = [1, 8, 96], strides = [1, 1, 1]} : vector<8x8x96xf32> to vector<1x8x96xf32>
    %468 = vector.shape_cast %467 : vector<1x8x96xf32> to vector<8x96xf32>
    %469 = vector.extract_strided_slice %468 {offsets = [0, 0], sizes = [8, 32], strides = [1, 1]} : vector<8x96xf32> to vector<8x32xf32>
    %470 = vector.extract_strided_slice %466 {offsets = [0, 0], sizes = [8, 32], strides = [1, 1]} : vector<8x96xf32> to vector<8x32xf32>
    %471 = arith.addf %469, %470 : vector<8x32xf32>
    %472 = arith.negf %471 : vector<8x32xf32>
    %473 = math.exp %472 : vector<8x32xf32>
    %cst_78 = arith.constant 1.000000e+00 : f32
    %474 = vector.broadcast %cst_78 : f32 to vector<8x32xf32>
    %475 = arith.addf %474, %473 : vector<8x32xf32>
    %476 = arith.divf %474, %475 : vector<8x32xf32>
    %477 = vector.extract_strided_slice %468 {offsets = [0, 32], sizes = [8, 32], strides = [1, 1]} : vector<8x96xf32> to vector<8x32xf32>
    %478 = vector.extract_strided_slice %466 {offsets = [0, 32], sizes = [8, 32], strides = [1, 1]} : vector<8x96xf32> to vector<8x32xf32>
    %479 = arith.addf %477, %478 : vector<8x32xf32>
    %480 = arith.negf %479 : vector<8x32xf32>
    %481 = math.exp %480 : vector<8x32xf32>
    %cst_79 = arith.constant 1.000000e+00 : f32
    %482 = vector.broadcast %cst_79 : f32 to vector<8x32xf32>
    %483 = arith.addf %482, %481 : vector<8x32xf32>
    %484 = arith.divf %482, %483 : vector<8x32xf32>
    %485 = vector.extract_strided_slice %468 {offsets = [0, 64], sizes = [8, 32], strides = [1, 1]} : vector<8x96xf32> to vector<8x32xf32>
    %486 = vector.extract_strided_slice %466 {offsets = [0, 64], sizes = [8, 32], strides = [1, 1]} : vector<8x96xf32> to vector<8x32xf32>
    %487 = arith.mulf %476, %486 : vector<8x32xf32>
    %488 = arith.addf %485, %487 : vector<8x32xf32>
    %489 = math.tanh %488 : vector<8x32xf32>
    %cst_80 = arith.constant 1.000000e+00 : f32
    %490 = vector.broadcast %cst_80 : f32 to vector<8x32xf32>
    %491 = arith.subf %490, %484 : vector<8x32xf32>
    %492 = arith.mulf %491, %489 : vector<8x32xf32>
    %493 = arith.mulf %484, %463 : vector<8x32xf32>
    %494 = arith.addf %492, %493 : vector<8x32xf32>
    %cst_81 = arith.constant dense<0.000000e+00> : vector<8x96xf32>
    %495 = tpu.matmul %494, %269, %cst_81 {dimension_numbers = #tpu.dot_dimension_numbers<[1], [0], [0], [1], [0, 0, 1, 1], [], []>} : vector<8x32xf32>, vector<32x96xf32>, vector<8x96xf32> -> vector<8x96xf32>
    %496 = vector.broadcast %271 : vector<1x96xf32> to vector<8x96xf32>
    %497 = arith.addf %495, %496 : vector<8x96xf32>
    %498 = vector.extract_strided_slice %276 {offsets = [7, 0, 0], sizes = [1, 8, 96], strides = [1, 1, 1]} : vector<8x8x96xf32> to vector<1x8x96xf32>
    %499 = vector.shape_cast %498 : vector<1x8x96xf32> to vector<8x96xf32>
    %500 = vector.extract_strided_slice %499 {offsets = [0, 0], sizes = [8, 32], strides = [1, 1]} : vector<8x96xf32> to vector<8x32xf32>
    %501 = vector.extract_strided_slice %497 {offsets = [0, 0], sizes = [8, 32], strides = [1, 1]} : vector<8x96xf32> to vector<8x32xf32>
    %502 = arith.addf %500, %501 : vector<8x32xf32>
    %503 = arith.negf %502 : vector<8x32xf32>
    %504 = math.exp %503 : vector<8x32xf32>
    %cst_82 = arith.constant 1.000000e+00 : f32
    %505 = vector.broadcast %cst_82 : f32 to vector<8x32xf32>
    %506 = arith.addf %505, %504 : vector<8x32xf32>
    %507 = arith.divf %505, %506 : vector<8x32xf32>
    %508 = vector.extract_strided_slice %499 {offsets = [0, 32], sizes = [8, 32], strides = [1, 1]} : vector<8x96xf32> to vector<8x32xf32>
    %509 = vector.extract_strided_slice %497 {offsets = [0, 32], sizes = [8, 32], strides = [1, 1]} : vector<8x96xf32> to vector<8x32xf32>
    %510 = arith.addf %508, %509 : vector<8x32xf32>
    %511 = arith.negf %510 : vector<8x32xf32>
    %512 = math.exp %511 : vector<8x32xf32>
    %cst_83 = arith.constant 1.000000e+00 : f32
    %513 = vector.broadcast %cst_83 : f32 to vector<8x32xf32>
    %514 = arith.addf %513, %512 : vector<8x32xf32>
    %515 = arith.divf %513, %514 : vector<8x32xf32>
    %516 = vector.extract_strided_slice %499 {offsets = [0, 64], sizes = [8, 32], strides = [1, 1]} : vector<8x96xf32> to vector<8x32xf32>
    %517 = vector.extract_strided_slice %497 {offsets = [0, 64], sizes = [8, 32], strides = [1, 1]} : vector<8x96xf32> to vector<8x32xf32>
    %518 = arith.mulf %507, %517 : vector<8x32xf32>
    %519 = arith.addf %516, %518 : vector<8x32xf32>
    %520 = math.tanh %519 : vector<8x32xf32>
    %cst_84 = arith.constant 1.000000e+00 : f32
    %521 = vector.broadcast %cst_84 : f32 to vector<8x32xf32>
    %522 = arith.subf %521, %515 : vector<8x32xf32>
    %523 = arith.mulf %522, %520 : vector<8x32xf32>
    %524 = arith.mulf %515, %494 : vector<8x32xf32>
    %525 = arith.addf %523, %524 : vector<8x32xf32>
    %c0_85 = arith.constant 0 : index
    %c0_86 = arith.constant 0 : index
    %526 = vector.load %arg9[%c0_85, %c0_86] : memref<8x32xf32, #tpu.memory_space<vmem>>, vector<8x32xf32>
    tpu.vector_store %arg9[%c0_85, %c0_86], %525 {strides = array<i32>} : memref<8x32xf32, #tpu.memory_space<vmem>>, vector<8x32xf32>,
    return
  }
}

</mosaic_0001>

<llo_original>
// kernel: tpu_custom_call.1
$region0: #{tpu_custom_call.1}
  #allocation0 [shape = 'u32[]', space=smem, size = 0x4, offset = 0x4, fixed_abs, tag = 'smem constant byte address 0x4 - core index']
  #allocation1 [shape = 'u32[72,128]{1,0:T(1,128)}', space=vmem, size = 0x9000, scoped, tag = 'internal scratch']
  %s0 = inlined_call_operand.vmem [shape: f32[8,8,4], index: 0, kind: input, shape index: {}]
  %s1 = inlined_call_operand.hbm [shape: f32[4,96], index: 1, kind: input, shape index: {}]
  %s2 = inlined_call_operand.vmem [shape: f32[32,96], index: 2, kind: input, shape index: {}]
  %s3 = inlined_call_operand.vmem [shape: f32[1,96], index: 3, kind: input, shape index: {}]
  %s4 = inlined_call_operand.vmem [shape: f32[1,96], index: 4, kind: input, shape index: {}]
  %s5 = inlined_call_operand.vmem [shape: f32[32,96], index: 5, kind: input, shape index: {}]
  %s6 = inlined_call_operand.vmem [shape: f32[32,96], index: 6, kind: input, shape index: {}]
  %s7 = inlined_call_operand.vmem [shape: f32[1,96], index: 7, kind: input, shape index: {}]
  %s8 = inlined_call_operand.vmem [shape: f32[1,96], index: 8, kind: input, shape index: {}]
  %s9 = inlined_call_operand.hbm [shape: f32[8,32], index: 9, kind: output, shape index: {}]
  %s10 = sld [smem:[#allocation0]]
  $region50: #{tpu_custom_call.1} parent=0
    _
  %s12 = ssub.s32 1, %s10
  %s13 = scalar_select 0, %s12, %s10
  $region1: #{tpu_custom_call.1} parent=0
    #allocation2 [shape = 'u8[2048]{0}', space=vmem, size = 0x800, scoped, tag = 'input window, operand 1, single buffered']
    #allocation3 [shape = 's32[1]{0}', space=sflag, size = 0x4, scoped, tag = 'scoped memory for tpu_custom_call.1']
    #allocation4 [shape = 's32[1]{0}', space=sflag, size = 0x4, scoped, tag = 'scoped memory for tpu_custom_call.1']
    #allocation5 [shape = 'u8[4096]{0}', space=vmem, size = 0x1000, scoped, tag = 'output window, operand 0, single buffered']
    %14 = vsyncpa [#allocation3], 0
    %15 = vsyncpa [#allocation4], 0
    // Predicated region
    $region2: #{tpu_custom_call.1} parent=1 // pred_check
      _
    $region3: #{tpu_custom_call.1} parent=1 // pred_check_branch
      %17 = sbr.rel (0) target = $region5
    $region4: #{tpu_custom_call.1} parent=1 // pred_region
      _
    $region5: #{tpu_custom_call.1} parent=1 // pred_fallthru
      _
    // Predicated region
    $region6: #{tpu_custom_call.1} parent=1 // pred_check
      _
    $region7: #{tpu_custom_call.1} parent=1 // pred_check_branch
      %19 = sbr.rel (0) target = $region9
    $region8: #{tpu_custom_call.1} parent=1 // pred_region
      %21 = vsyncadd [#allocation3], 0
      %s23 = sshll.u32 %s1, 4
      %s24 = int_to_ptr.hbm [resolvable:$true] %s23
      %s25 = sshll.u32 [#allocation2], 4
      %s26 = int_to_ptr.vmem [resolvable:$true] %s25
      %28 = dma.hbm_to_vmem [thread:$0]  %s24, 64, %s26, [#allocation3]
    $region9: #{tpu_custom_call.1} parent=1 // pred_fallthru
      _
    // Predicated region
    $region10: #{tpu_custom_call.1} parent=1 // pred_check
      _
    $region11: #{tpu_custom_call.1} parent=1 // pred_check_branch
      %30 = sbr.rel (0) target = $region13
    $region12: #{tpu_custom_call.1} parent=1 // pred_region
      _
    $region13: #{tpu_custom_call.1} parent=1 // pred_fallthru
      _
    // Predicated region
    $region14: #{tpu_custom_call.1} parent=1 // pred_check
      _
    $region15: #{tpu_custom_call.1} parent=1 // pred_check_branch
      %32 = sbr.rel (0) target = $region17
    $region16: #{tpu_custom_call.1} parent=1 // pred_region
      _
    $region17: #{tpu_custom_call.1} parent=1 // pred_fallthru
      _
    // Predicated region
    $region18: #{tpu_custom_call.1} parent=1 // pred_check
      _
    $region19: #{tpu_custom_call.1} parent=1 // pred_check_branch
      %34 = sbr.rel (0) target = $region21
    $region20: #{tpu_custom_call.1} parent=1 // pred_region
      _
    $region21: #{tpu_custom_call.1} parent=1 // pred_fallthru
      _
    // Predicated region
    $region22: #{tpu_custom_call.1} parent=1 // pred_check
      _
    $region23: #{tpu_custom_call.1} parent=1 // pred_check_branch
      %36 = sbr.rel (0) target = $region25
    $region24: #{tpu_custom_call.1} parent=1 // pred_region
      _
    $region25: #{tpu_custom_call.1} parent=1 // pred_fallthru
      _
    // Predicated region
    $region26: #{tpu_custom_call.1} parent=1 // pred_check
      _
    $region27: #{tpu_custom_call.1} parent=1 // pred_check_branch
      %38 = sbr.rel (0) target = $region29
    $region28: #{tpu_custom_call.1} parent=1 // pred_region
      _
    $region29: #{tpu_custom_call.1} parent=1 // pred_fallthru
      _
    // Predicated region
    $region30: #{tpu_custom_call.1} parent=1 // pred_check
      _
    $region31: #{tpu_custom_call.1} parent=1 // pred_check_branch
      %40 = sbr.rel (0) target = $region33
    $region32: #{tpu_custom_call.1} parent=1 // pred_region
      _
    $region33: #{tpu_custom_call.1} parent=1 // pred_fallthru
      _
    // Predicated region
    $region34: #{tpu_custom_call.1} parent=1 // pred_check
      _
    $region35: #{tpu_custom_call.1} parent=1 // pred_check_branch
      %42 = sbr.rel (0) target = $region37
    $region36: #{tpu_custom_call.1} parent=1 // pred_region
      _
    $region37: #{tpu_custom_call.1} parent=1 // pred_fallthru
      _
    // Predicated region
    $region38: #{tpu_custom_call.1} parent=1 // pred_check
      _
    $region39: #{tpu_custom_call.1} parent=1 // pred_check_branch
      %44 = sbr.rel (0) target = $region41
    $region40: #{tpu_custom_call.1} parent=1 // pred_region
      %46 = dma.done [#allocation3], 64
    $region41: #{tpu_custom_call.1} parent=1 // pred_fallthru
      _
    %v47 = vld [vmem:[%s0] sm:$0xff]
    %v48 = vld [vmem:[%s0 + $0x8] sm:$0xff]
    %v49 = vld [vmem:[%s0 + $0x10] sm:$0xff]
    %v50 = vld [vmem:[%s0 + $0x18] sm:$0xff]
    %v51 = vld [vmem:[%s0 + $0x20] sm:$0xff]
    %v52 = vld [vmem:[%s0 + $0x28] sm:$0xff]
    %v53 = vld [vmem:[%s0 + $0x30] sm:$0xff]
    %v54 = vld [vmem:[%s0 + $0x38] sm:$0xff]
    %v55 = vld [vmem:[#allocation2] sm:$0xf]
    %v56 = vld [vmem:[%s2] sm:$0xff]
    %v57 = vld [vmem:[%s2 + $0x8] sm:$0xff]
    %v58 = vld [vmem:[%s2 + $0x10] sm:$0xff]
    %v59 = vld [vmem:[%s2 + $0x18] sm:$0xff]
    %v60 = vld [vmem:[%s3] sm:$0x1]
    %v61 = vld [vmem:[%s4] sm:$0x1]
    %v63 = vperm.slane %v60, 0
    %vm65 = vcmask 31744
    %v67 = vsel %vm65, %v47, 0
    %v70 = vsel %vm65, %v48, 0
    %v73 = vsel %vm65, %v49, 0
    %v76 = vsel %vm65, %v50, 0
    %v79 = vsel %vm65, %v51, 0
    %v82 = vsel %vm65, %v52, 0
    %v85 = vsel %vm65, %v53, 0
    %v88 = vsel %vm65, %v54, 0
    %vm90 = vcmask 1043456
    %v92 = vsel %vm90, %v55, 0
    %94 = vmatpush.msra.mxu0 0.0
    %95 = vmatpush.msra.mxu0 0.0
    %96 = vmatpush.msra.mxu0 0.0
    %97 = vmatpush.msra.mxu0 0.0
    %98 = vmatpush.msra.mxu0 0.0
    %99 = vmatpush.msra.mxu0 0.0
    %100 = vmatpush.msra.mxu0 0.0
    %101 = vmatpush.msra.mxu0 0.0
    %102 = vmatpush.msra.mxu0 0.0
    %103 = vmatpush.msra.mxu0 0.0
    %104 = vmatpush.msra.mxu0 0.0
    %105 = vmatpush.msra.mxu0 0.0
    %106 = vmatpush.msra.mxu0 0.0
    %107 = vmatpush.msra.mxu0 0.0
    %108 = vmatpush.msra.mxu0 0.0
    %109 = vmatpush.msra.mxu0 %v92
    %110 = vmatmul.f32.gmra.mxu0 %v67
    %v111 = vpop.f32.mrf.mxu0
    %v112 = vadd.f32 %v63, %v111
    %113 = vmatmul.f32.gmra.mxu0 %v70
    %v114 = vpop.f32.mrf.mxu0
    %v115 = vadd.f32 %v63, %v114
    %116 = vmatmul.f32.gmra.mxu0 %v73
    %v117 = vpop.f32.mrf.mxu0
    %v118 = vadd.f32 %v63, %v117
    %119 = vmatmul.f32.gmra.mxu0 %v76
    %v120 = vpop.f32.mrf.mxu0
    %v121 = vadd.f32 %v63, %v120
    %122 = vmatmul.f32.gmra.mxu0 %v79
    %v123 = vpop.f32.mrf.mxu0
    %v124 = vadd.f32 %v63, %v123
    %125 = vmatmul.f32.gmra.mxu0 %v82
    %v126 = vpop.f32.mrf.mxu0
    %v127 = vadd.f32 %v63, %v126
    %128 = vmatmul.f32.gmra.mxu0 %v85
    %v129 = vpop.f32.mrf.mxu0
    %v130 = vadd.f32 %v63, %v129
    %131 = vmatmul.f32.gmra.mxu0 %v88
    %v132 = vpop.f32.mrf.mxu0
    %v133 = vadd.f32 %v63, %v132
    %134 = vdwg.mxu0
    %v136 = vperm.slane %v61, 0
    %vm138 = vcmask 261120
    %v140 = vsel %vm138, 0.0, 0
    %142 = vmatpush.msra.mxu0 0.0
    %143 = vmatpush.msra.mxu0 0.0
    %144 = vmatpush.msra.mxu0 0.0
    %145 = vmatpush.msra.mxu0 0.0
    %146 = vmatpush.msra.mxu0 0.0
    %147 = vmatpush.msra.mxu0 0.0
    %148 = vmatpush.msra.mxu0 0.0
    %149 = vmatpush.msra.mxu0 0.0
    %150 = vmatpush.msra.mxu0 0.0
    %151 = vmatpush.msra.mxu0 0.0
    %152 = vmatpush.msra.mxu0 0.0
    %153 = vmatpush.msra.mxu0 0.0
    %154 = vmatpush.msra.mxu0 %v59
    %155 = vmatpush.msra.mxu0 %v58
    %156 = vmatpush.msra.mxu0 %v57
    %157 = vmatpush.msra.mxu0 %v56
    %158 = vmatmul.f32.gmra.mxu0 %v140
    %v159 = vpop.f32.mrf.mxu0
    %v160 = vadd.f32 %v136, %v159
    %161 = vdwg.mxu0
    %v162 = vadd.f32 %v112, %v160
    %v163 = vxor.u32 %v162, 2147483648
    %v164 = vmul.f32 %v163, 1.442695
    %v165 = vpow.pop %v164
    %v166 = vadd.f32 %v165, 1.0
    %v167 = vrcp.pop %v166
    %v168 = vmul.f32 %v166, %v167
    %v169 = vsub.f32 1.0, %v168
    %v170 = vmul.f32 %v167, %v169
    %v171 = vadd.f32 %v167, %v170
    %vm172 = vweird.f32 %v166
    %vm173 = vweird.f32 %v167
    %vm174 = vmor %vm172, %vm173
    %v175 = vsel %vm174, %v167, %v171
    %v176 = vand.u32 2147483647, %v166
    %vm177 = vcmp.eq.f32.partialorder %v176, 8.507059e+37
    %v178 = vand.u32 %v166, 2147483648
    %v179 = vor.u32 1.1754944e-38, %v178
    %v180 = vsel %vm177, %v179, %v175
    %v181 = vmul.f32 1.0, %v180
    %183 = vrot.lane.b32.xlu0 %v160, 64
    %v184 = vpop.permute.xlu0 %183
    %v186 = vmul.f32 %v181, %v184
    %188 = vrot.lane.b32.xlu0 %v186, 64
    %v189 = vpop.permute.xlu0 %188
    %v191 = vadd.f32 %v112, %v189
    %v192 = vtanh.pop %v191
    %v193 = vsub.f32 1.0, %v181
    %195 = vrot.lane.b32.xlu0 %v192, 96
    %v196 = vpop.permute.xlu0 %195
    %v198 = vmul.f32 %v193, %v196
    %v199 = vmul.f32 %v181, 0.0
    %v200 = vadd.f32 %v198, %v199
    %202 = vrot.lane.b32.xlu0 %v200, 96
    %v203 = vpop.permute.xlu0 %202
    %v204 = vsel %vm138, %v203, 0
    %206 = vmatpush.msra.mxu0 0.0
    %207 = vmatpush.msra.mxu0 0.0
    %208 = vmatpush.msra.mxu0 0.0
    %209 = vmatpush.msra.mxu0 0.0
    %210 = vmatpush.msra.mxu0 0.0
    %211 = vmatpush.msra.mxu0 0.0
    %212 = vmatpush.msra.mxu0 0.0
    %213 = vmatpush.msra.mxu0 0.0
    %214 = vmatpush.msra.mxu0 0.0
    %215 = vmatpush.msra.mxu0 0.0
    %216 = vmatpush.msra.mxu0 0.0
    %217 = vmatpush.msra.mxu0 0.0
    %218 = vmatpush.msra.mxu0 %v59
    %219 = vmatpush.msra.mxu0 %v58
    %220 = vmatpush.msra.mxu0 %v57
    %221 = vmatpush.msra.mxu0 %v56
    %222 = vmatmul.f32.gmra.mxu0 %v204
    %v223 = vpop.f32.mrf.mxu0
    %v224 = vadd.f32 %v136, %v223
    %225 = vdwg.mxu0
    %v226 = vadd.f32 %v115, %v224
    %v227 = vxor.u32 %v226, 2147483648
    %v228 = vmul.f32 %v227, 1.442695
    %v229 = vpow.pop %v228
    %v230 = vadd.f32 %v229, 1.0
    %v231 = vrcp.pop %v230
    %v232 = vmul.f32 %v230, %v231
    %v233 = vsub.f32 1.0, %v232
    %v234 = vmul.f32 %v231, %v233
    %v235 = vadd.f32 %v231, %v234
    %vm236 = vweird.f32 %v230
    %vm237 = vweird.f32 %v231
    %vm238 = vmor %vm236, %vm237
    %v239 = vsel %vm238, %v231, %v235
    %v240 = vand.u32 2147483647, %v230
    %vm241 = vcmp.eq.f32.partialorder %v240, 8.507059e+37
    %v242 = vand.u32 %v230, 2147483648
    %v243 = vor.u32 1.1754944e-38, %v242
    %v244 = vsel %vm241, %v243, %v239
    %v245 = vmul.f32 1.0, %v244
    %247 = vrot.lane.b32.xlu0 %v224, 64
    %v248 = vpop.permute.xlu0 %247
    %v250 = vmul.f32 %v245, %v248
    %252 = vrot.lane.b32.xlu0 %v250, 64
    %v253 = vpop.permute.xlu0 %252
    %v255 = vadd.f32 %v115, %v253
    %v256 = vtanh.pop %v255
    %v257 = vsub.f32 1.0, %v245
    %259 = vrot.lane.b32.xlu0 %v256, 96
    %v260 = vpop.permute.xlu0 %259
    %v262 = vmul.f32 %v257, %v260
    %v263 = vmul.f32 %v245, %v200
    %v264 = vadd.f32 %v262, %v263
    %266 = vrot.lane.b32.xlu0 %v264, 96
    %v267 = vpop.permute.xlu0 %266
    %v268 = vsel %vm138, %v267, 0
    %270 = vmatpush.msra.mxu0 0.0
    %271 = vmatpush.msra.mxu0 0.0
    %272 = vmatpush.msra.mxu0 0.0
    %273 = vmatpush.msra.mxu0 0.0
    %274 = vmatpush.msra.mxu0 0.0
    %275 = vmatpush.msra.mxu0 0.0
    %276 = vmatpush.msra.mxu0 0.0
    %277 = vmatpush.msra.mxu0 0.0
    %278 = vmatpush.msra.mxu0 0.0
    %279 = vmatpush.msra.mxu0 0.0
    %280 = vmatpush.msra.mxu0 0.0
    %281 = vmatpush.msra.mxu0 0.0
    %282 = vmatpush.msra.mxu0 %v59
    %283 = vmatpush.msra.mxu0 %v58
    %284 = vmatpush.msra.mxu0 %v57
    %285 = vmatpush.msra.mxu0 %v56
    %286 = vmatmul.f32.gmra.mxu0 %v268
    %v287 = vpop.f32.mrf.mxu0
    %v288 = vadd.f32 %v136, %v287
    %289 = vdwg.mxu0
    %v290 = vadd.f32 %v118, %v288
    %v291 = vxor.u32 %v290, 2147483648
    %v292 = vmul.f32 %v291, 1.442695
    %v293 = vpow.pop %v292
    %v294 = vadd.f32 %v293, 1.0
    %v295 = vrcp.pop %v294
    %v296 = vmul.f32 %v294, %v295
    %v297 = vsub.f32 1.0, %v296
    %v298 = vmul.f32 %v295, %v297
    %v299 = vadd.f32 %v295, %v298
    %vm300 = vweird.f32 %v294
    %vm301 = vweird.f32 %v295
    %vm302 = vmor %vm300, %vm301
    %v303 = vsel %vm302, %v295, %v299
    %v304 = vand.u32 2147483647, %v294
    %vm305 = vcmp.eq.f32.partialorder %v304, 8.507059e+37
    %v306 = vand.u32 %v294, 2147483648
    %v307 = vor.u32 1.1754944e-38, %v306
    %v308 = vsel %vm305, %v307, %v303
    %v309 = vmul.f32 1.0, %v308
    %311 = vrot.lane.b32.xlu0 %v288, 64
    %v312 = vpop.permute.xlu0 %311
    %v314 = vmul.f32 %v309, %v312
    %316 = vrot.lane.b32.xlu0 %v314, 64
    %v317 = vpop.permute.xlu0 %316
    %v319 = vadd.f32 %v118, %v317
    %v320 = vtanh.pop %v319
    %v321 = vsub.f32 1.0, %v309
    %323 = vrot.lane.b32.xlu0 %v320, 96
    %v324 = vpop.permute.xlu0 %323
    %v326 = vmul.f32 %v321, %v324
    %v327 = vmul.f32 %v309, %v264
    %v328 = vadd.f32 %v326, %v327
    %330 = vrot.lane.b32.xlu0 %v328, 96
    %v331 = vpop.permute.xlu0 %330
    %v332 = vsel %vm138, %v331, 0
    %334 = vmatpush.msra.mxu0 0.0
    %335 = vmatpush.msra.mxu0 0.0
    %336 = vmatpush.msra.mxu0 0.0
    %337 = vmatpush.msra.mxu0 0.0
    %338 = vmatpush.msra.mxu0 0.0
    %339 = vmatpush.msra.mxu0 0.0
    %340 = vmatpush.msra.mxu0 0.0
    %341 = vmatpush.msra.mxu0 0.0
    %342 = vmatpush.msra.mxu0 0.0
    %343 = vmatpush.msra.mxu0 0.0
    %344 = vmatpush.msra.mxu0 0.0
    %345 = vmatpush.msra.mxu0 0.0
    %346 = vmatpush.msra.mxu0 %v59
    %347 = vmatpush.msra.mxu0 %v58
    %348 = vmatpush.msra.mxu0 %v57
    %349 = vmatpush.msra.mxu0 %v56
    %350 = vmatmul.f32.gmra.mxu0 %v332
    %v351 = vpop.f32.mrf.mxu0
    %v352 = vadd.f32 %v136, %v351
    %353 = vdwg.mxu0
    %v354 = vadd.f32 %v121, %v352
    %v355 = vxor.u32 %v354, 2147483648
    %v356 = vmul.f32 %v355, 1.442695
    %v357 = vpow.pop %v356
    %v358 = vadd.f32 %v357, 1.0
    %v359 = vrcp.pop %v358
    %v360 = vmul.f32 %v358, %v359
    %v361 = vsub.f32 1.0, %v360
    %v362 = vmul.f32 %v359, %v361
    %v363 = vadd.f32 %v359, %v362
    %vm364 = vweird.f32 %v358
    %vm365 = vweird.f32 %v359
    %vm366 = vmor %vm364, %vm365
    %v367 = vsel %vm366, %v359, %v363
    %v368 = vand.u32 2147483647, %v358
    %vm369 = vcmp.eq.f32.partialorder %v368, 8.507059e+37
    %v370 = vand.u32 %v358, 2147483648
    %v371 = vor.u32 1.1754944e-38, %v370
    %v372 = vsel %vm369, %v371, %v367
    %v373 = vmul.f32 1.0, %v372
    %375 = vrot.lane.b32.xlu0 %v352, 64
    %v376 = vpop.permute.xlu0 %375
    %v378 = vmul.f32 %v373, %v376
    %380 = vrot.lane.b32.xlu0 %v378, 64
    %v381 = vpop.permute.xlu0 %380
    %v383 = vadd.f32 %v121, %v381
    %v384 = vtanh.pop %v383
    %v385 = vsub.f32 1.0, %v373
    %387 = vrot.lane.b32.xlu0 %v384, 96
    %v388 = vpop.permute.xlu0 %387
    %v390 = vmul.f32 %v385, %v388
    %v391 = vmul.f32 %v373, %v328
    %v392 = vadd.f32 %v390, %v391
    %394 = vrot.lane.b32.xlu0 %v392, 96
    %v395 = vpop.permute.xlu0 %394
    %v396 = vsel %vm138, %v395, 0
    %398 = vmatpush.msra.mxu0 0.0
    %399 = vmatpush.msra.mxu0 0.0
    %400 = vmatpush.msra.mxu0 0.0
    %401 = vmatpush.msra.mxu0 0.0
    %402 = vmatpush.msra.mxu0 0.0
    %403 = vmatpush.msra.mxu0 0.0
    %404 = vmatpush.msra.mxu0 0.0
    %405 = vmatpush.msra.mxu0 0.0
    %406 = vmatpush.msra.mxu0 0.0
    %407 = vmatpush.msra.mxu0 0.0
    %408 = vmatpush.msra.mxu0 0.0
    %409 = vmatpush.msra.mxu0 0.0
    %410 = vmatpush.msra.mxu0 %v59
    %411 = vmatpush.msra.mxu0 %v58
    %412 = vmatpush.msra.mxu0 %v57
    %413 = vmatpush.msra.mxu0 %v56
    %414 = vmatmul.f32.gmra.mxu0 %v396
    %v415 = vpop.f32.mrf.mxu0
    %v416 = vadd.f32 %v136, %v415
    %417 = vdwg.mxu0
    %v418 = vadd.f32 %v124, %v416
    %v419 = vxor.u32 %v418, 2147483648
    %v420 = vmul.f32 %v419, 1.442695
    %v421 = vpow.pop %v420
    %v422 = vadd.f32 %v421, 1.0
    %v423 = vrcp.pop %v422
    %v424 = vmul.f32 %v422, %v423
    %v425 = vsub.f32 1.0, %v424
    %v426 = vmul.f32 %v423, %v425
    %v427 = vadd.f32 %v423, %v426
    %vm428 = vweird.f32 %v422
    %vm429 = vweird.f32 %v423
    %vm430 = vmor %vm428, %vm429
    %v431 = vsel %vm430, %v423, %v427
    %v432 = vand.u32 2147483647, %v422
    %vm433 = vcmp.eq.f32.partialorder %v432, 8.507059e+37
    %v434 = vand.u32 %v422, 2147483648
    %v435 = vor.u32 1.1754944e-38, %v434
    %v436 = vsel %vm433, %v435, %v431
    %v437 = vmul.f32 1.0, %v436
    %439 = vrot.lane.b32.xlu0 %v416, 64
    %v440 = vpop.permute.xlu0 %439
    %v442 = vmul.f32 %v437, %v440
    %444 = vrot.lane.b32.xlu0 %v442, 64
    %v445 = vpop.permute.xlu0 %444
    %v447 = vadd.f32 %v124, %v445
    %v448 = vtanh.pop %v447
    %v449 = vsub.f32 1.0, %v437
    %451 = vrot.lane.b32.xlu0 %v448, 96
    %v452 = vpop.permute.xlu0 %451
    %v454 = vmul.f32 %v449, %v452
    %v455 = vmul.f32 %v437, %v392
    %v456 = vadd.f32 %v454, %v455
    %458 = vrot.lane.b32.xlu0 %v456, 96
    %v459 = vpop.permute.xlu0 %458
    %v460 = vsel %vm138, %v459, 0
    %462 = vmatpush.msra.mxu0 0.0
    %463 = vmatpush.msra.mxu0 0.0
    %464 = vmatpush.msra.mxu0 0.0
    %465 = vmatpush.msra.mxu0 0.0
    %466 = vmatpush.msra.mxu0 0.0
    %467 = vmatpush.msra.mxu0 0.0
    %468 = vmatpush.msra.mxu0 0.0
    %469 = vmatpush.msra.mxu0 0.0
    %470 = vmatpush.msra.mxu0 0.0
    %471 = vmatpush.msra.mxu0 0.0
    %472 = vmatpush.msra.mxu0 0.0
    %473 = vmatpush.msra.mxu0 0.0
    %474 = vmatpush.msra.mxu0 %v59
    %475 = vmatpush.msra.mxu0 %v58
    %476 = vmatpush.msra.mxu0 %v57
    %477 = vmatpush.msra.mxu0 %v56
    %478 = vmatmul.f32.gmra.mxu0 %v460
    %v479 = vpop.f32.mrf.mxu0
    %v480 = vadd.f32 %v136, %v479
    %481 = vdwg.mxu0
    %v482 = vadd.f32 %v127, %v480
    %v483 = vxor.u32 %v482, 2147483648
    %v484 = vmul.f32 %v483, 1.442695
    %v485 = vpow.pop %v484
    %v486 = vadd.f32 %v485, 1.0
    %v487 = vrcp.pop %v486
    %v488 = vmul.f32 %v486, %v487
    %v489 = vsub.f32 1.0, %v488
    %v490 = vmul.f32 %v487, %v489
    %v491 = vadd.f32 %v487, %v490
    %vm492 = vweird.f32 %v486
    %vm493 = vweird.f32 %v487
    %vm494 = vmor %vm492, %vm493
    %v495 = vsel %vm494, %v487, %v491
    %v496 = vand.u32 2147483647, %v486
    %vm497 = vcmp.eq.f32.partialorder %v496, 8.507059e+37
    %v498 = vand.u32 %v486, 2147483648
    %v499 = vor.u32 1.1754944e-38, %v498
    %v500 = vsel %vm497, %v499, %v495
    %v501 = vmul.f32 1.0, %v500
    %503 = vrot.lane.b32.xlu0 %v480, 64
    %v504 = vpop.permute.xlu0 %503
    %v506 = vmul.f32 %v501, %v504
    %508 = vrot.lane.b32.xlu0 %v506, 64
    %v509 = vpop.permute.xlu0 %508
    %v511 = vadd.f32 %v127, %v509
    %v512 = vtanh.pop %v511
    %v513 = vsub.f32 1.0, %v501
    %515 = vrot.lane.b32.xlu0 %v512, 96
    %v516 = vpop.permute.xlu0 %515
    %v518 = vmul.f32 %v513, %v516
    %v519 = vmul.f32 %v501, %v456
    %v520 = vadd.f32 %v518, %v519
    %522 = vrot.lane.b32.xlu0 %v520, 96
    %v523 = vpop.permute.xlu0 %522
    %v524 = vsel %vm138, %v523, 0
    %526 = vmatpush.msra.mxu0 0.0
    %527 = vmatpush.msra.mxu0 0.0
    %528 = vmatpush.msra.mxu0 0.0
    %529 = vmatpush.msra.mxu0 0.0
    %530 = vmatpush.msra.mxu0 0.0
    %531 = vmatpush.msra.mxu0 0.0
    %532 = vmatpush.msra.mxu0 0.0
    %533 = vmatpush.msra.mxu0 0.0
    %534 = vmatpush.msra.mxu0 0.0
    %535 = vmatpush.msra.mxu0 0.0
    %536 = vmatpush.msra.mxu0 0.0
    %537 = vmatpush.msra.mxu0 0.0
    %538 = vmatpush.msra.mxu0 %v59
    %539 = vmatpush.msra.mxu0 %v58
    %540 = vmatpush.msra.mxu0 %v57
    %541 = vmatpush.msra.mxu0 %v56
    %542 = vmatmul.f32.gmra.mxu0 %v524
    %v543 = vpop.f32.mrf.mxu0
    %v544 = vadd.f32 %v136, %v543
    %545 = vdwg.mxu0
    %v546 = vadd.f32 %v130, %v544
    %v547 = vxor.u32 %v546, 2147483648
    %v548 = vmul.f32 %v547, 1.442695
    %v549 = vpow.pop %v548
    %v550 = vadd.f32 %v549, 1.0
    %v551 = vrcp.pop %v550
    %v552 = vmul.f32 %v550, %v551
    %v553 = vsub.f32 1.0, %v552
    %v554 = vmul.f32 %v551, %v553
    %v555 = vadd.f32 %v551, %v554
    %vm556 = vweird.f32 %v550
    %vm557 = vweird.f32 %v551
    %vm558 = vmor %vm556, %vm557
    %v559 = vsel %vm558, %v551, %v555
    %v560 = vand.u32 2147483647, %v550
    %vm561 = vcmp.eq.f32.partialorder %v560, 8.507059e+37
    %v562 = vand.u32 %v550, 2147483648
    %v563 = vor.u32 1.1754944e-38, %v562
    %v564 = vsel %vm561, %v563, %v559
    %v565 = vmul.f32 1.0, %v564
    %567 = vrot.lane.b32.xlu0 %v544, 64
    %v568 = vpop.permute.xlu0 %567
    %v570 = vmul.f32 %v565, %v568
    %572 = vrot.lane.b32.xlu0 %v570, 64
    %v573 = vpop.permute.xlu0 %572
    %v575 = vadd.f32 %v130, %v573
    %v576 = vtanh.pop %v575
    %v577 = vsub.f32 1.0, %v565
    %579 = vrot.lane.b32.xlu0 %v576, 96
    %v580 = vpop.permute.xlu0 %579
    %v582 = vmul.f32 %v577, %v580
    %v583 = vmul.f32 %v565, %v520
    %v584 = vadd.f32 %v582, %v583
    %586 = vrot.lane.b32.xlu0 %v584, 96
    %v587 = vpop.permute.xlu0 %586
    %v588 = vsel %vm138, %v587, 0
    %590 = vmatpush.msra.mxu0 0.0
    %591 = vmatpush.msra.mxu0 0.0
    %592 = vmatpush.msra.mxu0 0.0
    %593 = vmatpush.msra.mxu0 0.0
    %594 = vmatpush.msra.mxu0 0.0
    %595 = vmatpush.msra.mxu0 0.0
    %596 = vmatpush.msra.mxu0 0.0
    %597 = vmatpush.msra.mxu0 0.0
    %598 = vmatpush.msra.mxu0 0.0
    %599 = vmatpush.msra.mxu0 0.0
    %600 = vmatpush.msra.mxu0 0.0
    %601 = vmatpush.msra.mxu0 0.0
    %602 = vmatpush.msra.mxu0 %v59
    %603 = vmatpush.msra.mxu0 %v58
    %604 = vmatpush.msra.mxu0 %v57
    %605 = vmatpush.msra.mxu0 %v56
    %606 = vmatmul.f32.gmra.mxu0 %v588
    %v607 = vpop.f32.mrf.mxu0
    %v608 = vadd.f32 %v136, %v607
    %609 = vdwg.mxu0
    %v610 = vadd.f32 %v133, %v608
    %v611 = vxor.u32 %v610, 2147483648
    %v612 = vmul.f32 %v611, 1.442695
    %v613 = vpow.pop %v612
    %v614 = vadd.f32 %v613, 1.0
    %v615 = vrcp.pop %v614
    %v616 = vmul.f32 %v614, %v615
    %v617 = vsub.f32 1.0, %v616
    %v618 = vmul.f32 %v615, %v617
    %v619 = vadd.f32 %v615, %v618
    %vm620 = vweird.f32 %v614
    %vm621 = vweird.f32 %v615
    %vm622 = vmor %vm620, %vm621
    %v623 = vsel %vm622, %v615, %v619
    %v624 = vand.u32 2147483647, %v614
    %vm625 = vcmp.eq.f32.partialorder %v624, 8.507059e+37
    %v626 = vand.u32 %v614, 2147483648
    %v627 = vor.u32 1.1754944e-38, %v626
    %v628 = vsel %vm625, %v627, %v623
    %v629 = vmul.f32 1.0, %v628
    %631 = vrot.lane.b32.xlu0 %v608, 64
    %v632 = vpop.permute.xlu0 %631
    %v634 = vmul.f32 %v629, %v632
    %636 = vrot.lane.b32.xlu0 %v634, 64
    %v637 = vpop.permute.xlu0 %636
    %v639 = vadd.f32 %v133, %v637
    %v640 = vtanh.pop %v639
    %v641 = vsub.f32 1.0, %v629
    %643 = vrot.lane.b32.xlu0 %v640, 96
    %v644 = vpop.permute.xlu0 %643
    %v646 = vmul.f32 %v641, %v644
    %v647 = vmul.f32 %v629, %v584
    %v648 = vadd.f32 %v646, %v647
    %v649 = vld [vmem:[%s5] sm:$0xff]
    %v650 = vld [vmem:[%s5 + $0x8] sm:$0xff]
    %v651 = vld [vmem:[%s5 + $0x10] sm:$0xff]
    %v652 = vld [vmem:[%s5 + $0x18] sm:$0xff]
    %v653 = vld [vmem:[%s6] sm:$0xff]
    %v654 = vld [vmem:[%s6 + $0x8] sm:$0xff]
    %v655 = vld [vmem:[%s6 + $0x10] sm:$0xff]
    %v656 = vld [vmem:[%s6 + $0x18] sm:$0xff]
    %v657 = vld [vmem:[%s7] sm:$0x1]
    %v658 = vld [vmem:[%s8] sm:$0x1]
    %v660 = vperm.slane %v657, 0
    %663 = vrot.lane.b32.xlu0 %v648, 96
    %v664 = vpop.permute.xlu0 %663
    %v665 = vsel %vm138, %v664, 0
    %667 = vmatpush.msra.mxu0 0.0
    %668 = vmatpush.msra.mxu0 0.0
    %669 = vmatpush.msra.mxu0 0.0
    %670 = vmatpush.msra.mxu0 0.0
    %671 = vmatpush.msra.mxu0 0.0
    %672 = vmatpush.msra.mxu0 0.0
    %673 = vmatpush.msra.mxu0 0.0
    %674 = vmatpush.msra.mxu0 0.0
    %675 = vmatpush.msra.mxu0 0.0
    %676 = vmatpush.msra.mxu0 0.0
    %677 = vmatpush.msra.mxu0 0.0
    %678 = vmatpush.msra.mxu0 0.0
    %679 = vmatpush.msra.mxu0 %v652
    %680 = vmatpush.msra.mxu0 %v651
    %681 = vmatpush.msra.mxu0 %v650
    %682 = vmatpush.msra.mxu0 %v649
    %683 = vmatmul.f32.gmra.mxu0 %v204
    %v684 = vpop.f32.mrf.mxu0
    %v685 = vadd.f32 %v660, %v684
    %686 = vmatmul.f32.gmra.mxu0 %v268
    %v687 = vpop.f32.mrf.mxu0
    %v688 = vadd.f32 %v660, %v687
    %689 = vmatmul.f32.gmra.mxu0 %v332
    %v690 = vpop.f32.mrf.mxu0
    %v691 = vadd.f32 %v660, %v690
    %692 = vmatmul.f32.gmra.mxu0 %v396
    %v693 = vpop.f32.mrf.mxu0
    %v694 = vadd.f32 %v660, %v693
    %695 = vmatmul.f32.gmra.mxu0 %v460
    %v696 = vpop.f32.mrf.mxu0
    %v697 = vadd.f32 %v660, %v696
    %698 = vmatmul.f32.gmra.mxu0 %v524
    %v699 = vpop.f32.mrf.mxu0
    %v700 = vadd.f32 %v660, %v699
    %701 = vmatmul.f32.gmra.mxu0 %v588
    %v702 = vpop.f32.mrf.mxu0
    %v703 = vadd.f32 %v660, %v702
    %704 = vmatmul.f32.gmra.mxu0 %v665
    %v705 = vpop.f32.mrf.mxu0
    %v706 = vadd.f32 %v660, %v705
    %707 = vdwg.mxu0
    %v709 = vperm.slane %v658, 0
    %711 = vmatpush.msra.mxu0 0.0
    %712 = vmatpush.msra.mxu0 0.0
    %713 = vmatpush.msra.mxu0 0.0
    %714 = vmatpush.msra.mxu0 0.0
    %715 = vmatpush.msra.mxu0 0.0
    %716 = vmatpush.msra.mxu0 0.0
    %717 = vmatpush.msra.mxu0 0.0
    %718 = vmatpush.msra.mxu0 0.0
    %719 = vmatpush.msra.mxu0 0.0
    %720 = vmatpush.msra.mxu0 0.0
    %721 = vmatpush.msra.mxu0 0.0
    %722 = vmatpush.msra.mxu0 0.0
    %723 = vmatpush.msra.mxu0 %v656
    %724 = vmatpush.msra.mxu0 %v655
    %725 = vmatpush.msra.mxu0 %v654
    %726 = vmatpush.msra.mxu0 %v653
    %727 = vmatmul.f32.gmra.mxu0 %v140
    %v728 = vpop.f32.mrf.mxu0
    %v729 = vadd.f32 %v709, %v728
    %730 = vdwg.mxu0
    %v731 = vadd.f32 %v685, %v729
    %v732 = vxor.u32 %v731, 2147483648
    %v733 = vmul.f32 %v732, 1.442695
    %v734 = vpow.pop %v733
    %v735 = vadd.f32 %v734, 1.0
    %v736 = vrcp.pop %v735
    %v737 = vmul.f32 %v735, %v736
    %v738 = vsub.f32 1.0, %v737
    %v739 = vmul.f32 %v736, %v738
    %v740 = vadd.f32 %v736, %v739
    %vm741 = vweird.f32 %v735
    %vm742 = vweird.f32 %v736
    %vm743 = vmor %vm741, %vm742
    %v744 = vsel %vm743, %v736, %v740
    %v745 = vand.u32 2147483647, %v735
    %vm746 = vcmp.eq.f32.partialorder %v745, 8.507059e+37
    %v747 = vand.u32 %v735, 2147483648
    %v748 = vor.u32 1.1754944e-38, %v747
    %v749 = vsel %vm746, %v748, %v744
    %v750 = vmul.f32 1.0, %v749
    %752 = vrot.lane.b32.xlu0 %v729, 64
    %v753 = vpop.permute.xlu0 %752
    %v755 = vmul.f32 %v750, %v753
    %757 = vrot.lane.b32.xlu0 %v755, 64
    %v758 = vpop.permute.xlu0 %757
    %v760 = vadd.f32 %v685, %v758
    %v761 = vtanh.pop %v760
    %v762 = vsub.f32 1.0, %v750
    %764 = vrot.lane.b32.xlu0 %v761, 96
    %v765 = vpop.permute.xlu0 %764
    %v767 = vmul.f32 %v762, %v765
    %v768 = vmul.f32 %v750, 0.0
    %v769 = vadd.f32 %v767, %v768
    %771 = vrot.lane.b32.xlu0 %v769, 96
    %v772 = vpop.permute.xlu0 %771
    %v773 = vsel %vm138, %v772, 0
    %775 = vmatpush.msra.mxu0 0.0
    %776 = vmatpush.msra.mxu0 0.0
    %777 = vmatpush.msra.mxu0 0.0
    %778 = vmatpush.msra.mxu0 0.0
    %779 = vmatpush.msra.mxu0 0.0
    %780 = vmatpush.msra.mxu0 0.0
    %781 = vmatpush.msra.mxu0 0.0
    %782 = vmatpush.msra.mxu0 0.0
    %783 = vmatpush.msra.mxu0 0.0
    %784 = vmatpush.msra.mxu0 0.0
    %785 = vmatpush.msra.mxu0 0.0
    %786 = vmatpush.msra.mxu0 0.0
    %787 = vmatpush.msra.mxu0 %v656
    %788 = vmatpush.msra.mxu0 %v655
    %789 = vmatpush.msra.mxu0 %v654
    %790 = vmatpush.msra.mxu0 %v653
    %791 = vmatmul.f32.gmra.mxu0 %v773
    %v792 = vpop.f32.mrf.mxu0
    %v793 = vadd.f32 %v709, %v792
    %794 = vdwg.mxu0
    %v795 = vadd.f32 %v688, %v793
    %v796 = vxor.u32 %v795, 2147483648
    %v797 = vmul.f32 %v796, 1.442695
    %v798 = vpow.pop %v797
    %v799 = vadd.f32 %v798, 1.0
    %v800 = vrcp.pop %v799
    %v801 = vmul.f32 %v799, %v800
    %v802 = vsub.f32 1.0, %v801
    %v803 = vmul.f32 %v800, %v802
    %v804 = vadd.f32 %v800, %v803
    %vm805 = vweird.f32 %v799
    %vm806 = vweird.f32 %v800
    %vm807 = vmor %vm805, %vm806
    %v808 = vsel %vm807, %v800, %v804
    %v809 = vand.u32 2147483647, %v799
    %vm810 = vcmp.eq.f32.partialorder %v809, 8.507059e+37
    %v811 = vand.u32 %v799, 2147483648
    %v812 = vor.u32 1.1754944e-38, %v811
    %v813 = vsel %vm810, %v812, %v808
    %v814 = vmul.f32 1.0, %v813
    %816 = vrot.lane.b32.xlu0 %v793, 64
    %v817 = vpop.permute.xlu0 %816
    %v819 = vmul.f32 %v814, %v817
    %821 = vrot.lane.b32.xlu0 %v819, 64
    %v822 = vpop.permute.xlu0 %821
    %v824 = vadd.f32 %v688, %v822
    %v825 = vtanh.pop %v824
    %v826 = vsub.f32 1.0, %v814
    %828 = vrot.lane.b32.xlu0 %v825, 96
    %v829 = vpop.permute.xlu0 %828
    %v831 = vmul.f32 %v826, %v829
    %v832 = vmul.f32 %v814, %v769
    %v833 = vadd.f32 %v831, %v832
    %835 = vrot.lane.b32.xlu0 %v833, 96
    %v836 = vpop.permute.xlu0 %835
    %v837 = vsel %vm138, %v836, 0
    %839 = vmatpush.msra.mxu0 0.0
    %840 = vmatpush.msra.mxu0 0.0
    %841 = vmatpush.msra.mxu0 0.0
    %842 = vmatpush.msra.mxu0 0.0
    %843 = vmatpush.msra.mxu0 0.0
    %844 = vmatpush.msra.mxu0 0.0
    %845 = vmatpush.msra.mxu0 0.0
    %846 = vmatpush.msra.mxu0 0.0
    %847 = vmatpush.msra.mxu0 0.0
    %848 = vmatpush.msra.mxu0 0.0
    %849 = vmatpush.msra.mxu0 0.0
    %850 = vmatpush.msra.mxu0 0.0
    %851 = vmatpush.msra.mxu0 %v656
    %852 = vmatpush.msra.mxu0 %v655
    %853 = vmatpush.msra.mxu0 %v654
    %854 = vmatpush.msra.mxu0 %v653
    %855 = vmatmul.f32.gmra.mxu0 %v837
    %v856 = vpop.f32.mrf.mxu0
    %v857 = vadd.f32 %v709, %v856
    %858 = vdwg.mxu0
    %v859 = vadd.f32 %v691, %v857
    %v860 = vxor.u32 %v859, 2147483648
    %v861 = vmul.f32 %v860, 1.442695
    %v862 = vpow.pop %v861
    %v863 = vadd.f32 %v862, 1.0
    %v864 = vrcp.pop %v863
    %v865 = vmul.f32 %v863, %v864
    %v866 = vsub.f32 1.0, %v865
    %v867 = vmul.f32 %v864, %v866
    %v868 = vadd.f32 %v864, %v867
    %vm869 = vweird.f32 %v863
    %vm870 = vweird.f32 %v864
    %vm871 = vmor %vm869, %vm870
    %v872 = vsel %vm871, %v864, %v868
    %v873 = vand.u32 2147483647, %v863
    %vm874 = vcmp.eq.f32.partialorder %v873, 8.507059e+37
    %v875 = vand.u32 %v863, 2147483648
    %v876 = vor.u32 1.1754944e-38, %v875
    %v877 = vsel %vm874, %v876, %v872
    %v878 = vmul.f32 1.0, %v877
    %880 = vrot.lane.b32.xlu0 %v857, 64
    %v881 = vpop.permute.xlu0 %880
    %v883 = vmul.f32 %v878, %v881
    %885 = vrot.lane.b32.xlu0 %v883, 64
    %v886 = vpop.permute.xlu0 %885
    %v888 = vadd.f32 %v691, %v886
    %v889 = vtanh.pop %v888
    %v890 = vsub.f32 1.0, %v878
    %892 = vrot.lane.b32.xlu0 %v889, 96
    %v893 = vpop.permute.xlu0 %892
    %v895 = vmul.f32 %v890, %v893
    %v896 = vmul.f32 %v878, %v833
    %v897 = vadd.f32 %v895, %v896
    %899 = vrot.lane.b32.xlu0 %v897, 96
    %v900 = vpop.permute.xlu0 %899
    %v901 = vsel %vm138, %v900, 0
    %903 = vmatpush.msra.mxu0 0.0
    %904 = vmatpush.msra.mxu0 0.0
    %905 = vmatpush.msra.mxu0 0.0
    %906 = vmatpush.msra.mxu0 0.0
    %907 = vmatpush.msra.mxu0 0.0
    %908 = vmatpush.msra.mxu0 0.0
    %909 = vmatpush.msra.mxu0 0.0
    %910 = vmatpush.msra.mxu0 0.0
    %911 = vmatpush.msra.mxu0 0.0
    %912 = vmatpush.msra.mxu0 0.0
    %913 = vmatpush.msra.mxu0 0.0
    %914 = vmatpush.msra.mxu0 0.0
    %915 = vmatpush.msra.mxu0 %v656
    %916 = vmatpush.msra.mxu0 %v655
    %917 = vmatpush.msra.mxu0 %v654
    %918 = vmatpush.msra.mxu0 %v653
    %919 = vmatmul.f32.gmra.mxu0 %v901
    %v920 = vpop.f32.mrf.mxu0
    %v921 = vadd.f32 %v709, %v920
    %922 = vdwg.mxu0
    %v923 = vadd.f32 %v694, %v921
    %v924 = vxor.u32 %v923, 2147483648
    %v925 = vmul.f32 %v924, 1.442695
    %v926 = vpow.pop %v925
    %v927 = vadd.f32 %v926, 1.0
    %v928 = vrcp.pop %v927
    %v929 = vmul.f32 %v927, %v928
    %v930 = vsub.f32 1.0, %v929
    %v931 = vmul.f32 %v928, %v930
    %v932 = vadd.f32 %v928, %v931
    %vm933 = vweird.f32 %v927
    %vm934 = vweird.f32 %v928
    %vm935 = vmor %vm933, %vm934
    %v936 = vsel %vm935, %v928, %v932
    %v937 = vand.u32 2147483647, %v927
    %vm938 = vcmp.eq.f32.partialorder %v937, 8.507059e+37
    %v939 = vand.u32 %v927, 2147483648
    %v940 = vor.u32 1.1754944e-38, %v939
    %v941 = vsel %vm938, %v940, %v936
    %v942 = vmul.f32 1.0, %v941
    %944 = vrot.lane.b32.xlu0 %v921, 64
    %v945 = vpop.permute.xlu0 %944
    %v947 = vmul.f32 %v942, %v945
    %949 = vrot.lane.b32.xlu0 %v947, 64
    %v950 = vpop.permute.xlu0 %949
    %v952 = vadd.f32 %v694, %v950
    %v953 = vtanh.pop %v952
    %v954 = vsub.f32 1.0, %v942
    %956 = vrot.lane.b32.xlu0 %v953, 96
    %v957 = vpop.permute.xlu0 %956
    %v959 = vmul.f32 %v954, %v957
    %v960 = vmul.f32 %v942, %v897
    %v961 = vadd.f32 %v959, %v960
    %963 = vrot.lane.b32.xlu0 %v961, 96
    %v964 = vpop.permute.xlu0 %963
    %v965 = vsel %vm138, %v964, 0
    %967 = vmatpush.msra.mxu0 0.0
    %968 = vmatpush.msra.mxu0 0.0
    %969 = vmatpush.msra.mxu0 0.0
    %970 = vmatpush.msra.mxu0 0.0
    %971 = vmatpush.msra.mxu0 0.0
    %972 = vmatpush.msra.mxu0 0.0
    %973 = vmatpush.msra.mxu0 0.0
    %974 = vmatpush.msra.mxu0 0.0
    %975 = vmatpush.msra.mxu0 0.0
    %976 = vmatpush.msra.mxu0 0.0
    %977 = vmatpush.msra.mxu0 0.0
    %978 = vmatpush.msra.mxu0 0.0
    %979 = vmatpush.msra.mxu0 %v656
    %980 = vmatpush.msra.mxu0 %v655
    %981 = vmatpush.msra.mxu0 %v654
    %982 = vmatpush.msra.mxu0 %v653
    %983 = vmatmul.f32.gmra.mxu0 %v965
    %v984 = vpop.f32.mrf.mxu0
    %v985 = vadd.f32 %v709, %v984
    %986 = vdwg.mxu0
    %v987 = vadd.f32 %v697, %v985
    %v988 = vxor.u32 %v987, 2147483648
    %v989 = vmul.f32 %v988, 1.442695
    %v990 = vpow.pop %v989
    %v991 = vadd.f32 %v990, 1.0
    %v992 = vrcp.pop %v991
    %v993 = vmul.f32 %v991, %v992
    %v994 = vsub.f32 1.0, %v993
    %v995 = vmul.f32 %v992, %v994
    %v996 = vadd.f32 %v992, %v995
    %vm997 = vweird.f32 %v991
    %vm998 = vweird.f32 %v992
    %vm999 = vmor %vm997, %vm998
    %v1000 = vsel %vm999, %v992, %v996
    %v1001 = vand.u32 2147483647, %v991
    %vm1002 = vcmp.eq.f32.partialorder %v1001, 8.507059e+37
    %v1003 = vand.u32 %v991, 2147483648
    %v1004 = vor.u32 1.1754944e-38, %v1003
    %v1005 = vsel %vm1002, %v1004, %v1000
    %v1006 = vmul.f32 1.0, %v1005
    %1008 = vrot.lane.b32.xlu0 %v985, 64
    %v1009 = vpop.permute.xlu0 %1008
    %v1011 = vmul.f32 %v1006, %v1009
    %1013 = vrot.lane.b32.xlu0 %v1011, 64
    %v1014 = vpop.permute.xlu0 %1013
    %v1016 = vadd.f32 %v697, %v1014
    %v1017 = vtanh.pop %v1016
    %v1018 = vsub.f32 1.0, %v1006
    %1020 = vrot.lane.b32.xlu0 %v1017, 96
    %v1021 = vpop.permute.xlu0 %1020
    %v1023 = vmul.f32 %v1018, %v1021
    %v1024 = vmul.f32 %v1006, %v961
    %v1025 = vadd.f32 %v1023, %v1024
    %1027 = vrot.lane.b32.xlu0 %v1025, 96
    %v1028 = vpop.permute.xlu0 %1027
    %v1029 = vsel %vm138, %v1028, 0
    %1031 = vmatpush.msra.mxu0 0.0
    %1032 = vmatpush.msra.mxu0 0.0
    %1033 = vmatpush.msra.mxu0 0.0
    %1034 = vmatpush.msra.mxu0 0.0
    %1035 = vmatpush.msra.mxu0 0.0
    %1036 = vmatpush.msra.mxu0 0.0
    %1037 = vmatpush.msra.mxu0 0.0
    %1038 = vmatpush.msra.mxu0 0.0
    %1039 = vmatpush.msra.mxu0 0.0
    %1040 = vmatpush.msra.mxu0 0.0
    %1041 = vmatpush.msra.mxu0 0.0
    %1042 = vmatpush.msra.mxu0 0.0
    %1043 = vmatpush.msra.mxu0 %v656
    %1044 = vmatpush.msra.mxu0 %v655
    %1045 = vmatpush.msra.mxu0 %v654
    %1046 = vmatpush.msra.mxu0 %v653
    %1047 = vmatmul.f32.gmra.mxu0 %v1029
    %v1048 = vpop.f32.mrf.mxu0
    %v1049 = vadd.f32 %v709, %v1048
    %1050 = vdwg.mxu0
    %v1051 = vadd.f32 %v700, %v1049
    %v1052 = vxor.u32 %v1051, 2147483648
    %v1053 = vmul.f32 %v1052, 1.442695
    %v1054 = vpow.pop %v1053
    %v1055 = vadd.f32 %v1054, 1.0
    %v1056 = vrcp.pop %v1055
    %v1057 = vmul.f32 %v1055, %v1056
    %v1058 = vsub.f32 1.0, %v1057
    %v1059 = vmul.f32 %v1056, %v1058
    %v1060 = vadd.f32 %v1056, %v1059
    %vm1061 = vweird.f32 %v1055
    %vm1062 = vweird.f32 %v1056
    %vm1063 = vmor %vm1061, %vm1062
    %v1064 = vsel %vm1063, %v1056, %v1060
    %v1065 = vand.u32 2147483647, %v1055
    %vm1066 = vcmp.eq.f32.partialorder %v1065, 8.507059e+37
    %v1067 = vand.u32 %v1055, 2147483648
    %v1068 = vor.u32 1.1754944e-38, %v1067
    %v1069 = vsel %vm1066, %v1068, %v1064
    %v1070 = vmul.f32 1.0, %v1069
    %1072 = vrot.lane.b32.xlu0 %v1049, 64
    %v1073 = vpop.permute.xlu0 %1072
    %v1075 = vmul.f32 %v1070, %v1073
    %1077 = vrot.lane.b32.xlu0 %v1075, 64
    %v1078 = vpop.permute.xlu0 %1077
    %v1080 = vadd.f32 %v700, %v1078
    %v1081 = vtanh.pop %v1080
    %v1082 = vsub.f32 1.0, %v1070
    %1084 = vrot.lane.b32.xlu0 %v1081, 96
    %v1085 = vpop.permute.xlu0 %1084
    %v1087 = vmul.f32 %v1082, %v1085
    %v1088 = vmul.f32 %v1070, %v1025
    %v1089 = vadd.f32 %v1087, %v1088
    %1091 = vrot.lane.b32.xlu0 %v1089, 96
    %v1092 = vpop.permute.xlu0 %1091
    %v1093 = vsel %vm138, %v1092, 0
    %1095 = vmatpush.msra.mxu0 0.0
    %1096 = vmatpush.msra.mxu0 0.0
    %1097 = vmatpush.msra.mxu0 0.0
    %1098 = vmatpush.msra.mxu0 0.0
    %1099 = vmatpush.msra.mxu0 0.0
    %1100 = vmatpush.msra.mxu0 0.0
    %1101 = vmatpush.msra.mxu0 0.0
    %1102 = vmatpush.msra.mxu0 0.0
    %1103 = vmatpush.msra.mxu0 0.0
    %1104 = vmatpush.msra.mxu0 0.0
    %1105 = vmatpush.msra.mxu0 0.0
    %1106 = vmatpush.msra.mxu0 0.0
    %1107 = vmatpush.msra.mxu0 %v656
    %1108 = vmatpush.msra.mxu0 %v655
    %1109 = vmatpush.msra.mxu0 %v654
    %1110 = vmatpush.msra.mxu0 %v653
    %1111 = vmatmul.f32.gmra.mxu0 %v1093
    %v1112 = vpop.f32.mrf.mxu0
    %v1113 = vadd.f32 %v709, %v1112
    %1114 = vdwg.mxu0
    %v1115 = vadd.f32 %v703, %v1113
    %v1116 = vxor.u32 %v1115, 2147483648
    %v1117 = vmul.f32 %v1116, 1.442695
    %v1118 = vpow.pop %v1117
    %v1119 = vadd.f32 %v1118, 1.0
    %v1120 = vrcp.pop %v1119
    %v1121 = vmul.f32 %v1119, %v1120
    %v1122 = vsub.f32 1.0, %v1121
    %v1123 = vmul.f32 %v1120, %v1122
    %v1124 = vadd.f32 %v1120, %v1123
    %vm1125 = vweird.f32 %v1119
    %vm1126 = vweird.f32 %v1120
    %vm1127 = vmor %vm1125, %vm1126
    %v1128 = vsel %vm1127, %v1120, %v1124
    %v1129 = vand.u32 2147483647, %v1119
    %vm1130 = vcmp.eq.f32.partialorder %v1129, 8.507059e+37
    %v1131 = vand.u32 %v1119, 2147483648
    %v1132 = vor.u32 1.1754944e-38, %v1131
    %v1133 = vsel %vm1130, %v1132, %v1128
    %v1134 = vmul.f32 1.0, %v1133
    %1136 = vrot.lane.b32.xlu0 %v1113, 64
    %v1137 = vpop.permute.xlu0 %1136
    %v1139 = vmul.f32 %v1134, %v1137
    %1141 = vrot.lane.b32.xlu0 %v1139, 64
    %v1142 = vpop.permute.xlu0 %1141
    %v1144 = vadd.f32 %v703, %v1142
    %v1145 = vtanh.pop %v1144
    %v1146 = vsub.f32 1.0, %v1134
    %1148 = vrot.lane.b32.xlu0 %v1145, 96
    %v1149 = vpop.permute.xlu0 %1148
    %v1151 = vmul.f32 %v1146, %v1149
    %v1152 = vmul.f32 %v1134, %v1089
    %v1153 = vadd.f32 %v1151, %v1152
    %1155 = vrot.lane.b32.xlu0 %v1153, 96
    %v1156 = vpop.permute.xlu0 %1155
    %v1157 = vsel %vm138, %v1156, 0
    %1159 = vmatpush.msra.mxu0 0.0
    %1160 = vmatpush.msra.mxu0 0.0
    %1161 = vmatpush.msra.mxu0 0.0
    %1162 = vmatpush.msra.mxu0 0.0
    %1163 = vmatpush.msra.mxu0 0.0
    %1164 = vmatpush.msra.mxu0 0.0
    %1165 = vmatpush.msra.mxu0 0.0
    %1166 = vmatpush.msra.mxu0 0.0
    %1167 = vmatpush.msra.mxu0 0.0
    %1168 = vmatpush.msra.mxu0 0.0
    %1169 = vmatpush.msra.mxu0 0.0
    %1170 = vmatpush.msra.mxu0 0.0
    %1171 = vmatpush.msra.mxu0 %v656
    %1172 = vmatpush.msra.mxu0 %v655
    %1173 = vmatpush.msra.mxu0 %v654
    %1174 = vmatpush.msra.mxu0 %v653
    %1175 = vmatmul.f32.gmra.mxu0 %v1157
    %v1176 = vpop.f32.mrf.mxu0
    %v1177 = vadd.f32 %v709, %v1176
    %1178 = vdwg.mxu0
    %v1179 = vadd.f32 %v706, %v1177
    %v1180 = vxor.u32 %v1179, 2147483648
    %v1181 = vmul.f32 %v1180, 1.442695
    %v1182 = vpow.pop %v1181
    %v1183 = vadd.f32 %v1182, 1.0
    %v1184 = vrcp.pop %v1183
    %v1185 = vmul.f32 %v1183, %v1184
    %v1186 = vsub.f32 1.0, %v1185
    %v1187 = vmul.f32 %v1184, %v1186
    %v1188 = vadd.f32 %v1184, %v1187
    %vm1189 = vweird.f32 %v1183
    %vm1190 = vweird.f32 %v1184
    %vm1191 = vmor %vm1189, %vm1190
    %v1192 = vsel %vm1191, %v1184, %v1188
    %v1193 = vand.u32 2147483647, %v1183
    %vm1194 = vcmp.eq.f32.partialorder %v1193, 8.507059e+37
    %v1195 = vand.u32 %v1183, 2147483648
    %v1196 = vor.u32 1.1754944e-38, %v1195
    %v1197 = vsel %vm1194, %v1196, %v1192
    %v1198 = vmul.f32 1.0, %v1197
    %1200 = vrot.lane.b32.xlu0 %v1177, 64
    %v1201 = vpop.permute.xlu0 %1200
    %v1203 = vmul.f32 %v1198, %v1201
    %1205 = vrot.lane.b32.xlu0 %v1203, 64
    %v1206 = vpop.permute.xlu0 %1205
    %v1208 = vadd.f32 %v706, %v1206
    %v1209 = vtanh.pop %v1208
    %v1210 = vsub.f32 1.0, %v1198
    %1212 = vrot.lane.b32.xlu0 %v1209, 96
    %v1213 = vpop.permute.xlu0 %1212
    %v1215 = vmul.f32 %v1210, %v1213
    %v1216 = vmul.f32 %v1198, %v1153
    %v1217 = vadd.f32 %v1215, %v1216
    %1219 = vrot.lane.b32.xlu0 %v1217, 96
    %v1220 = vpop.permute.xlu0 %1219
    %1222 = vst.msk [vmem:[#allocation5] sm:$0xff] %vm138, %v1220
    // Predicated region
    $region42: #{tpu_custom_call.1} parent=1 // pred_check
      _
    $region43: #{tpu_custom_call.1} parent=1 // pred_check_branch
      %1224 = sbr.rel (0) target = $region45
    $region44: #{tpu_custom_call.1} parent=1 // pred_region
      %1226 = vsyncadd [#allocation4], 0
      %s1228 = sshll.u32 [#allocation5], 4
      %s1229 = int_to_ptr.vmem [resolvable:$true] %s1228
      %s1230 = sshll.u32 %s9, 4
      %s1231 = int_to_ptr.hbm [resolvable:$true] %s1230
      %1233 = dma.vmem_to_hbm [thread:$0]  %s1229, 128, %s1231, [#allocation4]
    $region45: #{tpu_custom_call.1} parent=1 // pred_fallthru
      _
    // Predicated region
    $region46: #{tpu_custom_call.1} parent=1 // pred_check
      _
    $region47: #{tpu_custom_call.1} parent=1 // pred_check_branch
      %1235 = sbr.rel (0) target = $region49
    $region48: #{tpu_custom_call.1} parent=1 // pred_region
      %1237 = dma.done [#allocation4], 128
    $region49: #{tpu_custom_call.1} parent=1 // pred_fallthru
      _
    %1238 = vsyncpa [#allocation3], 1
    %1239 = vsyncpa [#allocation4], 1

</llo_original>
